<compile_context>
chip_gen: v6e
topology: v6e:2x2x1
jax: 0.10.0
libtpu: 0.0.40
codegen_flags: <defaults>
</compile_context>

<pallas_src>
import jax
import jax.numpy as jnp
from jax.experimental import pallas as pl
from jax.experimental.pallas import tpu as pltpu


def _vq_kernel(x_ref, et_ref, e_ref, hesq_ref, q_ref, sse_ref):
    x = x_ref[...]                                    # (TN, D) native dtype
    e_t = et_ref[...]                                 # (D, K)  hoisted transpose
    half_esq = hesq_ref[...]                          # (1, K)  f32, 0.5*||E||^2

    # Distance matmul in standard (M,C)x(C,N) MXU form.
    # argmin_k ||x - e_k||^2 == argmax_k (x.e_k - 0.5*||e_k||^2).
    xe = jnp.dot(x, e_t, preferred_element_type=jnp.float32)      # (TN, K) f32
    score = xe - half_esq                                          # (TN, K) f32

    k = e_t.shape[1]
    iota = jax.lax.broadcasted_iota(jnp.int32, score.shape, 1)    # (TN, K)
    max_val = jnp.max(score, axis=-1, keepdims=True)              # (TN, 1)
    # first index achieving the max (== torch.argmin-on-dist tie semantics)
    ids = jnp.min(jnp.where(score == max_val, iota, k),
                  axis=-1, keepdims=True)                         # (TN, 1)

    if k <= 2048:
        # Small codebooks: one_hot @ E on the MXU (exact: single 1.0 per row);
        # keep it in the codebook dtype so bf16 codebooks stay on the fast path.
        one_hot = (iota == ids).astype(e_ref.dtype)               # (TN, K)
        q = jnp.dot(one_hot, e_ref[...],
                    preferred_element_type=jnp.float32)           # (TN, D) f32
    else:
        # Large codebooks: row gather from the VMEM-resident codebook instead
        # of a second (TN,K)x(K,D) MXU pass (halves MXU flops, drops one_hot).
        q = jnp.take(e_ref[...], ids[:, 0], axis=0).astype(jnp.float32)

    q_ref[...] = q.astype(q_ref.dtype)

    # Per-tile SSE partial reduced to an (8, D) slab: VPU adds over
    # vreg-aligned sublane groups, single store.  Direct (q-x)^2 form kept
    # (numerically safer than the min_val + ||x||^2 shortcut).
    diff = q - x.astype(jnp.float32)
    d2 = diff * diff                                              # (TN, D) f32
    tn, d = d2.shape
    sse_ref[...] = jnp.sum(d2.reshape(tn // 8, 8, d), axis=0)[None]


def vector_quantizer(x, embedding, beta=0.25, tile_n=512):
    """x: (N, D) latents (embedding dim last), embedding: (K, D).

    Returns (quantized (N, D), vq_loss scalar) — forward values of the module.
    """
    n, d = x.shape
    k, d_e = embedding.shape
    assert d == d_e
    assert n % 8 == 0, "flattened latent rows must be a multiple of 8 (sublanes)"

    # Tile selection:
    #  * target >= 4 tiles so the "parallel" grid axis fills v7x's two
    #    TensorCores (>= 2 tiles each) and pipelines the x/q DMAs,
    #  * cap tile_n so the (tile_n, K) f32 intermediates (xe/score/iota/one_hot)
    #    stay well under VMEM for production codebook sizes (v7x: 64 MiB).
    target = max(8, (n // 4) // 8 * 8)
    tile_n = min(tile_n, target)
    while tile_n > 8 and (n % tile_n != 0
                          or 4 * tile_n * k * 4 > 24 * 1024 * 1024):
        tile_n -= 8
    assert tile_n >= 8 and tile_n % 8 == 0 and n % tile_n == 0
    n_tiles = n // tile_n

    # Hoisted, grid-invariant constants (resident in VMEM across the grid):
    #   E^T  -> distance matmul in standard MXU form (no per-step relayout)
    #   0.5*||E||^2 -> kernel does a single subtract (no -2 scale pass).
    e_t = jnp.transpose(embedding)                                    # (D, K)
    half_esq = 0.5 * jnp.sum(embedding.astype(jnp.float32) ** 2,
                             axis=-1)[None, :]                        # (1, K)

    # Per-chip VMEM limit: ~3/4 of physical (96 MiB on v5e/v6e, 48 MiB on v7x).
    try:
        phys = pltpu.get_tpu_info().vmem_capacity_bytes
        vmem_limit = int(min(96 << 20, max(32 << 20, (phys * 3) // 4)))
    except Exception:
        vmem_limit = 48 << 20   # conservative fallback: fits v7x's 64 MiB

    x_bytes = jnp.dtype(x.dtype).itemsize
    e_bytes = jnp.dtype(embedding.dtype).itemsize
    cost = pl.CostEstimate(
        flops=4 * n * k * d,                       # distance + one_hot matmuls
        transcendentals=0,
        bytes_accessed=(2 * n * d * x_bytes        # x read + q write
                        + 2 * k * d * e_bytes      # E + E^T (resident)
                        + k * 4                    # 0.5*||E||^2
                        + n_tiles * 8 * d * 4))    # SSE partials

    def const_spec(shape):
        # Constant index_map -> single-buffered resident block.
        return pl.BlockSpec(shape, lambda i: (0,) * len(shape),
                            pipeline_mode=pl.Buffered(1))

    q, sse = pl.pallas_call(
        _vq_kernel,
        out_shape=(jax.ShapeDtypeStruct((n, d), x.dtype),
                   jax.ShapeDtypeStruct((n_tiles, 8, d), jnp.float32)),
        grid_spec=pltpu.PrefetchScalarGridSpec(
            num_scalar_prefetch=0,
            grid=(n_tiles,),
            in_specs=[
                pl.BlockSpec((tile_n, d), lambda i: (i, 0)),   # x tile (unpadded)
                const_spec((d, k)),                            # E^T (resident)
                const_spec((k, d)),                            # E   (resident)
                const_spec((1, k)),                            # 0.5*||E||^2
            ],
            out_specs=[
                pl.BlockSpec((tile_n, d), lambda i: (i, 0)),   # quantized tile
                pl.BlockSpec((1, 8, d), lambda i: (i, 0, 0)),  # SSE partial
            ],
        ),
        compiler_params=pltpu.CompilerParams(
            dimension_semantics=("parallel",),                 # shard across TCs
            vmem_limit_bytes=vmem_limit),
        cost_estimate=cost,
    )(x, e_t, embedding, half_esq)

    mse = jnp.sum(sse) / jnp.float32(n * d)
    # Forward value of commitment_loss*beta + embedding_loss (.detach() only
    # changes gradients).
    vq_loss = mse * beta + mse
    # TODO(synk): forward-only — the module's detach() semantics (separate
    # commitment/embedding grads + straight-through estimator) need a custom_vjp.
    return q, vq_loss


def vector_quantizer_ref(x, embedding, beta=0.25):
    dist = (jnp.sum(x ** 2, axis=-1, keepdims=True)
            - 2.0 * x @ embedding.T
            + jnp.sum(embedding ** 2, axis=-1))
    ids = jnp.argmin(dist, axis=-1)
    q = embedding[ids]
    mse = jnp.mean((q - x) ** 2)
    return q, mse * beta + mse


if __name__ == "__main__":
    # deterministic synthetic parameters (nn.Embedding default init ~ N(0, 1))
    num_embeddings = 128
    embedding_dim = 64
    beta = 0.25

    key = jax.random.PRNGKey(0)
    k_emb, k_x = jax.random.split(key)
    embedding_w = jax.random.normal(k_emb, (num_embeddings, embedding_dim),
                                    jnp.float32)

    # latents in channels-last layout (axis=-1): B=4, H=W=16, C=64 -> N=1024 rows
    B, H, W = 4, 16, 16
    latents = jax.random.normal(k_x, (B, H, W, embedding_dim), jnp.float32)
    x = latents.reshape(-1, embedding_dim)          # (1024, 64)

    quantized, vq_loss = vector_quantizer(x, embedding_w, beta=beta)
    quantized = jax.block_until_ready(quantized)
    vq_loss = jax.block_until_ready(vq_loss)

    q_ref, loss_ref = vector_quantizer_ref(x, embedding_w, beta=beta)
    assert jnp.allclose(quantized, q_ref, atol=1e-5, rtol=1e-5)
    assert jnp.allclose(vq_loss, loss_ref, atol=1e-5, rtol=1e-5)

    print("KERNEL_OK")
</pallas_src>

<mosaic_0001>
module attributes {stable_mosaic.version = 11 : i64} {
  func.func @_vq_kernel(%arg0: i32, %arg1: memref<256x64xf32, #tpu.memory_space<vmem>>, %arg2: memref<64x128xf32, #tpu.memory_space<vmem>>, %arg3: memref<128x64xf32, #tpu.memory_space<vmem>>, %arg4: memref<1x128xf32, #tpu.memory_space<vmem>>, %arg5: memref<256x64xf32, #tpu.memory_space<vmem>>, %arg6: memref<1x8x64xf32, #tpu.memory_space<vmem>>) attributes {dimension_semantics = [#tpu.dimension_semantics<parallel>], iteration_bounds = array<i64: 4>, scalar_prefetch = 0 : i64, scratch_operands = 0 : i64, tpu.core_type = #tpu.core_type<tc>, window_params = [{transform_indices = @transform_0, window_bounds = array<i64: 256, 64>}, {pipeline_mode = #tpu.pipeline_mode<synchronous>, transform_indices = @transform_1, window_bounds = array<i64: 64, 128>}, {pipeline_mode = #tpu.pipeline_mode<synchronous>, transform_indices = @transform_2, window_bounds = array<i64: 128, 64>}, {pipeline_mode = #tpu.pipeline_mode<synchronous>, transform_indices = @transform_3, window_bounds = array<i64: 1, 128>}, {transform_indices = @transform_4, window_bounds = array<i64: 256, 64>}, {transform_indices = @transform_5, window_bounds = array<i64: 1, 8, 64>}]} {
    %c0 = arith.constant 0 : index
    %c0_0 = arith.constant 0 : index
    %0 = vector.load %arg1[%c0, %c0_0] : memref<256x64xf32, #tpu.memory_space<vmem>>, vector<256x64xf32>
    %c0_1 = arith.constant 0 : index
    %c0_2 = arith.constant 0 : index
    %1 = vector.load %arg2[%c0_1, %c0_2] : memref<64x128xf32, #tpu.memory_space<vmem>>, vector<64x128xf32>
    %c0_3 = arith.constant 0 : index
    %c0_4 = arith.constant 0 : index
    %2 = vector.load %arg4[%c0_3, %c0_4] : memref<1x128xf32, #tpu.memory_space<vmem>>, vector<1x128xf32>
    %cst = arith.constant dense<0.000000e+00> : vector<256x128xf32>
    %3 = tpu.matmul %0, %1, %cst {dimension_numbers = #tpu.dot_dimension_numbers<[1], [0], [0], [1], [0, 0, 1, 1], [], []>} : vector<256x64xf32>, vector<64x128xf32>, vector<256x128xf32> -> vector<256x128xf32>
    %4 = vector.broadcast %2 : vector<1x128xf32> to vector<256x128xf32>
    %5 = arith.subf %3, %4 : vector<256x128xf32>
    %6 = tpu.iota {dimensions = array<i32: 1>} : vector<256x128xi32>
    %cst_5 = arith.constant dense<0xFF800000> : vector<256xf32>
    %7 = vector.multi_reduction <maximumf>, %5, %cst_5 [1] : vector<256x128xf32> to vector<256xf32>
    %8 = vector.shape_cast %7 : vector<256xf32> to vector<256x1xf32>
    %9 = vector.broadcast %8 : vector<256x1xf32> to vector<256x128xf32>
    %10 = arith.cmpf oeq, %5, %9 : vector<256x128xf32>
    %c128_i32 = arith.constant 128 : i32
    %11 = vector.broadcast %c128_i32 : i32 to vector<256x128xi32>
    %12 = arith.select %10, %6, %11 : vector<256x128xi1>, vector<256x128xi32>
    %cst_6 = arith.constant dense<2147483647> : vector<256xi32>
    %13 = vector.multi_reduction <minsi>, %12, %cst_6 [1] : vector<256x128xi32> to vector<256xi32>
    %14 = vector.shape_cast %13 : vector<256xi32> to vector<256x1xi32>
    %15 = vector.broadcast %14 : vector<256x1xi32> to vector<256x128xi32>
    %16 = arith.cmpi eq, %6, %15 : vector<256x128xi32>
    %17 = arith.extui %16 : vector<256x128xi1> to vector<256x128xi32>
    %18 = arith.sitofp %17 : vector<256x128xi32> to vector<256x128xf32>
    %c0_7 = arith.constant 0 : index
    %c0_8 = arith.constant 0 : index
    %19 = vector.load %arg3[%c0_7, %c0_8] : memref<128x64xf32, #tpu.memory_space<vmem>>, vector<128x64xf32>
    %cst_9 = arith.constant dense<0.000000e+00> : vector<256x64xf32>
    %20 = tpu.matmul %18, %19, %cst_9 {dimension_numbers = #tpu.dot_dimension_numbers<[1], [0], [0], [1], [0, 0, 1, 1], [], []>} : vector<256x128xf32>, vector<128x64xf32>, vector<256x64xf32> -> vector<256x64xf32>
    %c0_10 = arith.constant 0 : index
    %c0_11 = arith.constant 0 : index
    %21 = vector.load %arg5[%c0_10, %c0_11] : memref<256x64xf32, #tpu.memory_space<vmem>>, vector<256x64xf32>
    tpu.vector_store %arg5[%c0_10, %c0_11], %20 {strides = array<i32>} : memref<256x64xf32, #tpu.memory_space<vmem>>, vector<256x64xf32>,
    %22 = arith.subf %20, %0 : vector<256x64xf32>
    %23 = arith.mulf %22, %22 : vector<256x64xf32>
    %24 = vector.shape_cast %23 : vector<256x64xf32> to vector<32x8x64xf32>
    %cst_12 = arith.constant dense<0.000000e+00> : vector<8x64xf32>
    %25 = vector.multi_reduction <add>, %24, %cst_12 [0] : vector<32x8x64xf32> to vector<8x64xf32>
    %26 = vector.shape_cast %25 : vector<8x64xf32> to vector<1x8x64xf32>
    %c0_13 = arith.constant 0 : index
    %c0_14 = arith.constant 0 : index
    %c0_15 = arith.constant 0 : index
    %27 = vector.load %arg6[%c0_13, %c0_14, %c0_15] : memref<1x8x64xf32, #tpu.memory_space<vmem>>, vector<1x8x64xf32>
    tpu.vector_store %arg6[%c0_13, %c0_14, %c0_15], %26 {strides = array<i32>} : memref<1x8x64xf32, #tpu.memory_space<vmem>>, vector<1x8x64xf32>,
    return
  }
  func.func @transform_0(%arg0: i32) -> (i32, i32) {
    %c0_i32 = arith.constant 0 : i32
    %c0_i32_0 = arith.constant 0 : i32
    return %arg0, %c0_i32 : i32, i32
  }
  func.func @transform_1(%arg0: i32) -> (i32, i32) {
    %c0_i32 = arith.constant 0 : i32
    %c0_i32_0 = arith.constant 0 : i32
    %c0_i32_1 = arith.constant 0 : i32
    return %c0_i32, %c0_i32_0 : i32, i32
  }
  func.func @transform_2(%arg0: i32) -> (i32, i32) {
    %c0_i32 = arith.constant 0 : i32
    %c0_i32_0 = arith.constant 0 : i32
    %c0_i32_1 = arith.constant 0 : i32
    return %c0_i32, %c0_i32_0 : i32, i32
  }
  func.func @transform_3(%arg0: i32) -> (i32, i32) {
    %c0_i32 = arith.constant 0 : i32
    %c0_i32_0 = arith.constant 0 : i32
    %c0_i32_1 = arith.constant 0 : i32
    return %c0_i32, %c0_i32_0 : i32, i32
  }
  func.func @transform_4(%arg0: i32) -> (i32, i32) {
    %c0_i32 = arith.constant 0 : i32
    %c0_i32_0 = arith.constant 0 : i32
    return %arg0, %c0_i32 : i32, i32
  }
  func.func @transform_5(%arg0: i32) -> (i32, i32, i32) {
    %c0_i32 = arith.constant 0 : i32
    %c0_i32_0 = arith.constant 0 : i32
    %c0_i32_1 = arith.constant 0 : i32
    return %arg0, %c0_i32, %c0_i32_0 : i32, i32, i32
  }
}

</mosaic_0001>

<llo_original>
// kernel: tpu_custom_call.1
$region0: #{tpu_custom_call.1}
  #allocation0 [shape = 'u32[]', space=smem, size = 0x4, offset = 0x4, fixed_abs, tag = 'smem constant byte address 0x4 - core index']
  #allocation1 [shape = 'u32[144,128]{1,0:T(1,128)}', space=vmem, size = 0x12000, scoped, tag = 'internal scratch']
  %s0 = inlined_call_operand.vmem [shape: f32[1024,64], index: 0, kind: input, shape index: {}]
  %s1 = inlined_call_operand.vmem [shape: f32[64,128], index: 1, kind: input, shape index: {}]
  %s2 = inlined_call_operand.vmem [shape: f32[128,64], index: 2, kind: input, shape index: {}]
  %s3 = inlined_call_operand.vmem [shape: f32[1,128], index: 3, kind: input, shape index: {}]
  %s4 = inlined_call_operand.vmem [shape: f32[1024,64], index: 4, kind: output, shape index: {0}]
  %s5 = inlined_call_operand.hbm [shape: f32[4,8,64], index: 5, kind: output, shape index: {1}]
  %6 = xla_tuple %s4, %s5
  %s7 = sld [smem:[#allocation0]]
  $region57: #{tpu_custom_call.1} parent=0
    _
  %s9 = ssub.s32 1, %s7
  %s10 = scalar_select 0, %s9, %s7
  $region1: #{tpu_custom_call.1} parent=0
    #allocation2 [shape = 'u8[8192]{0}', space=vmem, size = 0x2000, scoped, tag = 'output window, operand 1']
    #allocation3 [shape = 's32[2]{0}', space=sflag, size = 0x8, scoped, tag = 'scoped memory for tpu_custom_call.1']
    %11 = vsyncpa [#allocation3], 0
    %s12 = scalar_lea.sflag [#allocation3], 1
    %13 = vsyncpa %s12, 0
    loop: start=0, step=1, limit=6
    $region2: #{tpu_custom_call.1} parent=1 // loop_pre_header
      _
    $region3: #{tpu_custom_call.1} parent=1 // loop_header
      %s15 = sphi 0, %s19
      %p16 = scmp.ge.s32.totalorder %s15, 6
      %s25 = sphi 0, %s27
      %s28 = sphi 0, %s25
      %s29 = sphi 0, %s28
      %s45 = sphi 0, %s29
      %s49 = sphi 0, %s49
      %s51 = sphi 0, %s49
      %s52 = sphi 0, %s51
      %s66 = sphi 0, %s52
      %s70 = sphi 0, %s70
      %s72 = sphi 0, %s70
      %s73 = sphi 0, %s72
      %s87 = sphi 0, %s73
      %s91 = sphi 0, %s91
      %s93 = sphi 0, %s91
      %s94 = sphi 0, %s93
      %s108 = sphi 0, %s94
      %s114 = sphi 0, %s116
      %s117 = sphi 0, %s114
      %s118 = sphi 0, %s117
      %s134 = sphi 0, %s118
      %s140 = sphi 0, %s142
      %s143 = sphi 0, %s140
      %s144 = sphi 0, %s143
      %s160 = sphi 0, %s144
    $region4: #{tpu_custom_call.1} parent=1 // loop_header_branch
      %18 = sbr.rel (%p16) target = $region8
    $region5: #{tpu_custom_call.1} parent=1 // loop_body
      %s20 = ssub.s32 %s15, 1
      %s21 = ssub.s32 %s15, 2
      %s22 = sadd.s32 %s15, 1
      %s23 = ssub.s32 %s15, %s22
      %p24 = scmp.eq.s32.totalorder %s23, 0
      %s26 = sadd.s32 %s25, 1
      %s27 = scalar_select %p24, %s25, %s26
      %p30 = pneg %p24
      %p31 = scmp.eq.s32.totalorder %s15, 3
      %p32 = por %p30, %p31
      %p33 = scmp.ne.s32.totalorder %s25, %s28
      %p34 = scmp.eq.s32.totalorder %s15, 0
      %p35 = por %p33, %p34
      %p36 = scmp.ne.s32.totalorder %s25, %s28
      %p37 = scmp.eq.s32.totalorder %s20, 3
      %p38 = por %p36, %p37
      %p39 = scmp.ne.s32.totalorder %s28, %s29
      %p40 = scmp.eq.s32.totalorder %s20, 0
      %p41 = por %p39, %p40
      %p42 = scmp.ne.s32.totalorder %s28, %s29
      %p43 = scmp.eq.s32.totalorder %s21, 3
      %p44 = por %p42, %p43
      %p46 = scmp.ne.s32.totalorder %s29, %s45
      %p47 = scmp.eq.s32.totalorder %s21, 0
      %p48 = por %p46, %p47
      %s50 = sadd.s32 %s49, 1
      %p53 = scmp.eq.s32.totalorder %s15, 3
      %p54 = scmp.ne.s32.totalorder %s49, %s51
      %p55 = scmp.eq.s32.totalorder %s15, 0
      %p56 = por %p54, %p55
      %p57 = scmp.ne.s32.totalorder %s49, %s51
      %p58 = scmp.eq.s32.totalorder %s20, 3
      %p59 = por %p57, %p58
      %p60 = scmp.ne.s32.totalorder %s51, %s52
      %p61 = scmp.eq.s32.totalorder %s20, 0
      %p62 = por %p60, %p61
      %p63 = scmp.ne.s32.totalorder %s51, %s52
      %p64 = scmp.eq.s32.totalorder %s21, 3
      %p65 = por %p63, %p64
      %p67 = scmp.ne.s32.totalorder %s52, %s66
      %p68 = scmp.eq.s32.totalorder %s21, 0
      %p69 = por %p67, %p68
      %s71 = sadd.s32 %s70, 1
      %p74 = scmp.eq.s32.totalorder %s15, 3
      %p75 = scmp.ne.s32.totalorder %s70, %s72
      %p76 = scmp.eq.s32.totalorder %s15, 0
      %p77 = por %p75, %p76
      %p78 = scmp.ne.s32.totalorder %s70, %s72
      %p79 = scmp.eq.s32.totalorder %s20, 3
      %p80 = por %p78, %p79
      %p81 = scmp.ne.s32.totalorder %s72, %s73
      %p82 = scmp.eq.s32.totalorder %s20, 0
      %p83 = por %p81, %p82
      %p84 = scmp.ne.s32.totalorder %s72, %s73
      %p85 = scmp.eq.s32.totalorder %s21, 3
      %p86 = por %p84, %p85
      %p88 = scmp.ne.s32.totalorder %s73, %s87
      %p89 = scmp.eq.s32.totalorder %s21, 0
      %p90 = por %p88, %p89
      %s92 = sadd.s32 %s91, 1
      %p95 = scmp.eq.s32.totalorder %s15, 3
      %p96 = scmp.ne.s32.totalorder %s91, %s93
      %p97 = scmp.eq.s32.totalorder %s15, 0
      %p98 = por %p96, %p97
      %p99 = scmp.ne.s32.totalorder %s91, %s93
      %p100 = scmp.eq.s32.totalorder %s20, 3
      %p101 = por %p99, %p100
      %p102 = scmp.ne.s32.totalorder %s93, %s94
      %p103 = scmp.eq.s32.totalorder %s20, 0
      %p104 = por %p102, %p103
      %p105 = scmp.ne.s32.totalorder %s93, %s94
      %p106 = scmp.eq.s32.totalorder %s21, 3
      %p107 = por %p105, %p106
      %p109 = scmp.ne.s32.totalorder %s94, %s108
      %p110 = scmp.eq.s32.totalorder %s21, 0
      %p111 = por %p109, %p110
      %s112 = ssub.s32 %s15, %s22
      %p113 = scmp.eq.s32.totalorder %s112, 0
      %s115 = sadd.s32 %s114, 1
      %s116 = scalar_select %p113, %s114, %s115
      %p119 = pneg %p113
      %p120 = scmp.eq.s32.totalorder %s15, 3
      %p121 = por %p119, %p120
      %p122 = scmp.ne.s32.totalorder %s114, %s117
      %p123 = scmp.eq.s32.totalorder %s15, 0
      %p124 = por %p122, %p123
      %p125 = scmp.ne.s32.totalorder %s114, %s117
      %p126 = scmp.eq.s32.totalorder %s20, 3
      %p127 = por %p125, %p126
      %p128 = scmp.ne.s32.totalorder %s117, %s118
      %p129 = scmp.eq.s32.totalorder %s20, 0
      %p130 = por %p128, %p129
      %p131 = scmp.ne.s32.totalorder %s117, %s118
      %p132 = scmp.eq.s32.totalorder %s21, 3
      %p133 = por %p131, %p132
      %p135 = scmp.ne.s32.totalorder %s118, %s134
      %p136 = scmp.eq.s32.totalorder %s21, 0
      %p137 = por %p135, %p136
      %s138 = ssub.s32 %s15, %s22
      %p139 = scmp.eq.s32.totalorder %s138, 0
      %s141 = sadd.s32 %s140, 1
      %s142 = scalar_select %p139, %s140, %s141
      %p145 = pneg %p139
      %p146 = scmp.eq.s32.totalorder %s15, 3
      %p147 = por %p145, %p146
      %p148 = scmp.ne.s32.totalorder %s140, %s143
      %p149 = scmp.eq.s32.totalorder %s15, 0
      %p150 = por %p148, %p149
      %p151 = scmp.ne.s32.totalorder %s140, %s143
      %p152 = scmp.eq.s32.totalorder %s20, 3
      %p153 = por %p151, %p152
      %p154 = scmp.ne.s32.totalorder %s143, %s144
      %p155 = scmp.eq.s32.totalorder %s20, 0
      %p156 = por %p154, %p155
      %p157 = scmp.ne.s32.totalorder %s143, %s144
      %p158 = scmp.eq.s32.totalorder %s21, 3
      %p159 = por %p157, %p158
      %p161 = scmp.ne.s32.totalorder %s144, %s160
      %p162 = scmp.eq.s32.totalorder %s21, 0
      %p163 = por %p161, %p162
      %p164 = scmp.le.s32.totalorder 1, %s15
      %p165 = scmp.lt.s32.totalorder %s15, 5
      %p166 = pnand %p164, %p165
      %p167 = pneg %p166
      // Predicated region
      $region9: #{tpu_custom_call.1} parent=5 // pred_check
        _
      $region10: #{tpu_custom_call.1} parent=5 // pred_check_branch
        %169 = sbr.rel (%p166) target = $region12
      $region11: #{tpu_custom_call.1} parent=5 // pred_region
        %s170 = ssub.s32 %s15, 1
        // Predicated region
        $region13: #{tpu_custom_call.1} parent=11 // pred_check
          %p171 = pneg %p62
        $region14: #{tpu_custom_call.1} parent=11 // pred_check_branch
          %173 = sbr.rel (%p171) target = $region16
        $region15: #{tpu_custom_call.1} parent=11 // pred_region
          _
        $region16: #{tpu_custom_call.1} parent=11 // pred_fallthru
          _
        // Predicated region
        $region17: #{tpu_custom_call.1} parent=11 // pred_check
          %p174 = pneg %p83
        $region18: #{tpu_custom_call.1} parent=11 // pred_check_branch
          %176 = sbr.rel (%p174) target = $region20
        $region19: #{tpu_custom_call.1} parent=11 // pred_region
          _
        $region20: #{tpu_custom_call.1} parent=11 // pred_fallthru
          _
        // Predicated region
        $region21: #{tpu_custom_call.1} parent=11 // pred_check
          %p177 = pneg %p104
        $region22: #{tpu_custom_call.1} parent=11 // pred_check_branch
          %179 = sbr.rel (%p177) target = $region24
        $region23: #{tpu_custom_call.1} parent=11 // pred_region
          _
        $region24: #{tpu_custom_call.1} parent=11 // pred_fallthru
          _
      $region12: #{tpu_custom_call.1} parent=5 // pred_fallthru
        _
      %p180 = scmp.lt.s32.totalorder %s15, 4
      // Predicated region
      $region25: #{tpu_custom_call.1} parent=5 // pred_check
        %p181 = pneg %p180
      $region26: #{tpu_custom_call.1} parent=5 // pred_check_branch
        %183 = sbr.rel (%p181) target = $region28
      $region27: #{tpu_custom_call.1} parent=5 // pred_region
        // Predicated region
        $region29: #{tpu_custom_call.1} parent=27 // pred_check
          %p184 = pneg %p35
        $region30: #{tpu_custom_call.1} parent=27 // pred_check_branch
          %186 = sbr.rel (%p184) target = $region32
        $region31: #{tpu_custom_call.1} parent=27 // pred_region
          %s187 = smul.u32 32, %s15
          %p188 = scmp.lt.s32.totalorder %s187, 127
          %s189 = scalar_select %p188, %s187, 127
          %s190 = smul.addr %s189, 8
          %s191 = scalar_lea.vmem %s0, %s190
          %s192 = smul.u32 32, %s15
        $region32: #{tpu_custom_call.1} parent=27 // pred_fallthru
          _
      $region28: #{tpu_custom_call.1} parent=5 // pred_fallthru
        _
      %p193 = scmp.le.s32.totalorder 1, %s15
      %p194 = scmp.lt.s32.totalorder %s15, 5
      %p195 = pnand %p193, %p194
      %p196 = pneg %p195
      // Predicated region
      $region33: #{tpu_custom_call.1} parent=5 // pred_check
        _
      $region34: #{tpu_custom_call.1} parent=5 // pred_check_branch
        %198 = sbr.rel (%p195) target = $region36
      $region35: #{tpu_custom_call.1} parent=5 // pred_region
        %s199 = ssub.s32 %s15, 1
        %s200 = smul.u32 32, %s20
        %p201 = scmp.lt.s32.totalorder %s200, 127
        %s202 = scalar_select %p201, %s200, 127
        %s203 = smul.addr %s202, 8
        %s204 = scalar_lea.vmem %s0, %s203
        %p205 = pneg %p41
        %p206 = pneg %p38
        %p207 = pneg %p62
        %p208 = pneg %p59
        %p209 = pneg %p83
        %p210 = pneg %p80
        %p211 = pneg %p104
        %p212 = pneg %p101
        %p213 = pneg %p130
        %p214 = pneg %p127
        %s215 = smul.u32 32, %s20
        %p216 = scmp.lt.s32.totalorder %s215, 127
        %s217 = scalar_select %p216, %s215, 127
        %s218 = smul.addr %s217, 8
        %s219 = scalar_lea.vmem %s4, %s218
        %p220 = pneg %p156
        %p221 = pneg %p153
        %s222 = sand.u32 %s143, 1
        %s223 = scalar_lea.sflag [#allocation3], %s222
        %s224 = sand.u32 %s143, 1
        %s225 = smul.addr %s224, 8
        %s226 = scalar_lea.vmem [#allocation2], %s225
        %s227 = smul.u32 32, %s20
        %p228 = scmp.lt.s32.totalorder %s227, 127
        %s229 = scalar_select %p228, %s227, 127
        %s230 = smul.addr %s229, 8
        %s231 = scalar_lea.vmem %s0, %s230
        %s232 = smul.u32 32, %s20
        %s233 = smul.u32 32, %s20
        %p234 = scmp.lt.s32.totalorder %s233, 127
        %s235 = scalar_select %p234, %s233, 127
        %s236 = smul.addr %s235, 8
        %s237 = scalar_lea.vmem %s4, %s236
        %s238 = smul.u32 32, %s20
        %v239 = vld [vmem:[%s231] sm:$0xff]
        %v240 = vld [vmem:[%s231 + $0x8] sm:$0xff]
        %v241 = vld [vmem:[%s231 + $0x10] sm:$0xff]
        %v242 = vld [vmem:[%s231 + $0x18] sm:$0xff]
        %v243 = vld [vmem:[%s231 + $0x20] sm:$0xff]
        %v244 = vld [vmem:[%s231 + $0x28] sm:$0xff]
        %v245 = vld [vmem:[%s231 + $0x30] sm:$0xff]
        %v246 = vld [vmem:[%s231 + $0x38] sm:$0xff]
        %v247 = vld [vmem:[%s231 + $0x40] sm:$0xff]
        %v248 = vld [vmem:[%s231 + $0x48] sm:$0xff]
        %v249 = vld [vmem:[%s231 + $0x50] sm:$0xff]
        %v250 = vld [vmem:[%s231 + $0x58] sm:$0xff]
        %v251 = vld [vmem:[%s231 + $0x60] sm:$0xff]
        %v252 = vld [vmem:[%s231 + $0x68] sm:$0xff]
        %v253 = vld [vmem:[%s231 + $0x70] sm:$0xff]
        %v254 = vld [vmem:[%s231 + $0x78] sm:$0xff]
        %v255 = vld [vmem:[%s231 + $0x80] sm:$0xff]
        %v256 = vld [vmem:[%s231 + $0x88] sm:$0xff]
        %v257 = vld [vmem:[%s231 + $0x90] sm:$0xff]
        %v258 = vld [vmem:[%s231 + $0x98] sm:$0xff]
        %v259 = vld [vmem:[%s231 + $0xa0] sm:$0xff]
        %v260 = vld [vmem:[%s231 + $0xa8] sm:$0xff]
        %v261 = vld [vmem:[%s231 + $0xb0] sm:$0xff]
        %v262 = vld [vmem:[%s231 + $0xb8] sm:$0xff]
        %v263 = vld [vmem:[%s231 + $0xc0] sm:$0xff]
        %v264 = vld [vmem:[%s231 + $0xc8] sm:$0xff]
        %v265 = vld [vmem:[%s231 + $0xd0] sm:$0xff]
        %v266 = vld [vmem:[%s231 + $0xd8] sm:$0xff]
        %v267 = vld [vmem:[%s231 + $0xe0] sm:$0xff]
        %v268 = vld [vmem:[%s231 + $0xe8] sm:$0xff]
        %v269 = vld [vmem:[%s231 + $0xf0] sm:$0xff]
        %v270 = vld [vmem:[%s231 + $0xf8] sm:$0xff]
        %v271 = vld [vmem:[%s1] sm:$0xff]
        %v272 = vld [vmem:[%s1 + $0x8] sm:$0xff]
        %v273 = vld [vmem:[%s1 + $0x10] sm:$0xff]
        %v274 = vld [vmem:[%s1 + $0x18] sm:$0xff]
        %v275 = vld [vmem:[%s1 + $0x20] sm:$0xff]
        %v276 = vld [vmem:[%s1 + $0x28] sm:$0xff]
        %v277 = vld [vmem:[%s1 + $0x30] sm:$0xff]
        %v278 = vld [vmem:[%s1 + $0x38] sm:$0xff]
        %v279 = vld [vmem:[%s3] sm:$0x1]
        %vm280 = vcmask 523264
        %v282 = vsel %vm280, %v239, 0
        %v285 = vsel %vm280, %v240, 0
        %v288 = vsel %vm280, %v241, 0
        %v291 = vsel %vm280, %v242, 0
        %v294 = vsel %vm280, %v243, 0
        %v297 = vsel %vm280, %v244, 0
        %v300 = vsel %vm280, %v245, 0
        %v303 = vsel %vm280, %v246, 0
        %v306 = vsel %vm280, %v247, 0
        %v309 = vsel %vm280, %v248, 0
        %v312 = vsel %vm280, %v249, 0
        %v315 = vsel %vm280, %v250, 0
        %v318 = vsel %vm280, %v251, 0
        %v321 = vsel %vm280, %v252, 0
        %v324 = vsel %vm280, %v253, 0
        %v327 = vsel %vm280, %v254, 0
        %v330 = vsel %vm280, %v255, 0
        %v333 = vsel %vm280, %v256, 0
        %v336 = vsel %vm280, %v257, 0
        %v339 = vsel %vm280, %v258, 0
        %v342 = vsel %vm280, %v259, 0
        %v345 = vsel %vm280, %v260, 0
        %v348 = vsel %vm280, %v261, 0
        %v351 = vsel %vm280, %v262, 0
        %v354 = vsel %vm280, %v263, 0
        %v357 = vsel %vm280, %v264, 0
        %v360 = vsel %vm280, %v265, 0
        %v363 = vsel %vm280, %v266, 0
        %v366 = vsel %vm280, %v267, 0
        %v369 = vsel %vm280, %v268, 0
        %v372 = vsel %vm280, %v269, 0
        %v375 = vsel %vm280, %v270, 0
        %377 = vmatprep.subr.mxu0 0.0
        %378 = vmatpush1.msra.mxu0 0.0
        %379 = vmatprep.subr.mxu0 0.0
        %380 = vmatpush1.msra.mxu0 0.0
        %381 = vmatprep.subr.mxu0 0.0
        %382 = vmatpush1.msra.mxu0 0.0
        %383 = vmatprep.subr.mxu0 0.0
        %384 = vmatpush1.msra.mxu0 0.0
        %385 = vmatprep.subr.mxu0 0.0
        %386 = vmatpush1.msra.mxu0 0.0
        %387 = vmatprep.subr.mxu0 0.0
        %388 = vmatpush1.msra.mxu0 0.0
        %389 = vmatprep.subr.mxu0 0.0
        %390 = vmatpush1.msra.mxu0 0.0
        %391 = vmatprep.subr.mxu0 0.0
        %392 = vmatpush1.msra.mxu0 0.0
        %393 = vmatprep.subr.mxu0 0.0
        %394 = vmatpush1.msra.mxu0 %v278
        %395 = vmatprep.subr.mxu0 0.0
        %396 = vmatpush1.msra.mxu0 %v277
        %397 = vmatprep.subr.mxu0 0.0
        %398 = vmatpush1.msra.mxu0 %v276
        %399 = vmatprep.subr.mxu0 0.0
        %400 = vmatpush1.msra.mxu0 %v275
        %401 = vmatprep.subr.mxu0 0.0
        %402 = vmatpush1.msra.mxu0 %v274
        %403 = vmatprep.subr.mxu0 0.0
        %404 = vmatpush1.msra.mxu0 %v273
        %405 = vmatprep.subr.mxu0 0.0
        %406 = vmatpush1.msra.mxu0 %v272
        %407 = vmatprep.subr.mxu0 0.0
        %408 = vmatpush1.msra.mxu0 %v271
        %409 = vmatprep.subr.mxu0 0.0
        %410 = vmatpush2.msra.mxu0 0.0
        %411 = vmatprep.subr.mxu0 0.0
        %412 = vmatpush2.msra.mxu0 0.0
        %413 = vmatprep.subr.mxu0 0.0
        %414 = vmatpush2.msra.mxu0 0.0
        %415 = vmatprep.subr.mxu0 0.0
        %416 = vmatpush2.msra.mxu0 0.0
        %417 = vmatprep.subr.mxu0 0.0
        %418 = vmatpush2.msra.mxu0 0.0
        %419 = vmatprep.subr.mxu0 0.0
        %420 = vmatpush2.msra.mxu0 0.0
        %421 = vmatprep.subr.mxu0 0.0
        %422 = vmatpush2.msra.mxu0 0.0
        %423 = vmatprep.subr.mxu0 0.0
        %424 = vmatpush2.msra.mxu0 0.0
        %425 = vmatprep.subr.mxu0 0.0
        %426 = vmatpush2.msra.mxu0 0.0
        %427 = vmatprep.subr.mxu0 0.0
        %428 = vmatpush2.msra.mxu0 0.0
        %429 = vmatprep.subr.mxu0 0.0
        %430 = vmatpush2.msra.mxu0 0.0
        %431 = vmatprep.subr.mxu0 0.0
        %432 = vmatpush2.msra.mxu0 0.0
        %433 = vmatprep.subr.mxu0 0.0
        %434 = vmatpush2.msra.mxu0 0.0
        %435 = vmatprep.subr.mxu0 0.0
        %436 = vmatpush2.msra.mxu0 0.0
        %437 = vmatprep.subr.mxu0 0.0
        %438 = vmatpush2.msra.mxu0 0.0
        %439 = vmatprep.subr.mxu0 0.0
        %440 = vmatpush2.msra.mxu0 0.0
        %441 = vmatprep.mubr.f32.mxu0 0.0
        %442 = vmatmul.mubr.f32.gmra.mxu0 %v282
        %v443 = vpop.f32.mrf.mxu0
        %v444 = vadd.f32 0.0, %v443
        %v445 = vpop.f32.mrf.mxu0
        %446 = vmatprep.mubr.f32.mxu0 0.0
        %447 = vmatmul.mubr.f32.gmra.mxu0 %v285
        %v448 = vpop.f32.mrf.mxu0
        %v449 = vadd.f32 0.0, %v448
        %v450 = vpop.f32.mrf.mxu0
        %451 = vmatprep.mubr.f32.mxu0 0.0
        %452 = vmatmul.mubr.f32.gmra.mxu0 %v288
        %v453 = vpop.f32.mrf.mxu0
        %v454 = vadd.f32 0.0, %v453
        %v455 = vpop.f32.mrf.mxu0
        %456 = vmatprep.mubr.f32.mxu0 0.0
        %457 = vmatmul.mubr.f32.gmra.mxu0 %v291
        %v458 = vpop.f32.mrf.mxu0
        %v459 = vadd.f32 0.0, %v458
        %v460 = vpop.f32.mrf.mxu0
        %461 = vmatprep.mubr.f32.mxu0 0.0
        %462 = vmatmul.mubr.f32.gmra.mxu0 %v294
        %v463 = vpop.f32.mrf.mxu0
        %v464 = vadd.f32 0.0, %v463
        %v465 = vpop.f32.mrf.mxu0
        %466 = vmatprep.mubr.f32.mxu0 0.0
        %467 = vmatmul.mubr.f32.gmra.mxu0 %v297
        %v468 = vpop.f32.mrf.mxu0
        %v469 = vadd.f32 0.0, %v468
        %v470 = vpop.f32.mrf.mxu0
        %471 = vmatprep.mubr.f32.mxu0 0.0
        %472 = vmatmul.mubr.f32.gmra.mxu0 %v300
        %v473 = vpop.f32.mrf.mxu0
        %v474 = vadd.f32 0.0, %v473
        %v475 = vpop.f32.mrf.mxu0
        %476 = vmatprep.mubr.f32.mxu0 0.0
        %477 = vmatmul.mubr.f32.gmra.mxu0 %v303
        %v478 = vpop.f32.mrf.mxu0
        %v479 = vadd.f32 0.0, %v478
        %v480 = vpop.f32.mrf.mxu0
        %481 = vmatprep.mubr.f32.mxu0 0.0
        %482 = vmatmul.mubr.f32.gmra.mxu0 %v306
        %v483 = vpop.f32.mrf.mxu0
        %v484 = vadd.f32 0.0, %v483
        %v485 = vpop.f32.mrf.mxu0
        %486 = vmatprep.mubr.f32.mxu0 0.0
        %487 = vmatmul.mubr.f32.gmra.mxu0 %v309
        %v488 = vpop.f32.mrf.mxu0
        %v489 = vadd.f32 0.0, %v488
        %v490 = vpop.f32.mrf.mxu0
        %491 = vmatprep.mubr.f32.mxu0 0.0
        %492 = vmatmul.mubr.f32.gmra.mxu0 %v312
        %v493 = vpop.f32.mrf.mxu0
        %v494 = vadd.f32 0.0, %v493
        %v495 = vpop.f32.mrf.mxu0
        %496 = vmatprep.mubr.f32.mxu0 0.0
        %497 = vmatmul.mubr.f32.gmra.mxu0 %v315
        %v498 = vpop.f32.mrf.mxu0
        %v499 = vadd.f32 0.0, %v498
        %v500 = vpop.f32.mrf.mxu0
        %501 = vmatprep.mubr.f32.mxu0 0.0
        %502 = vmatmul.mubr.f32.gmra.mxu0 %v318
        %v503 = vpop.f32.mrf.mxu0
        %v504 = vadd.f32 0.0, %v503
        %v505 = vpop.f32.mrf.mxu0
        %506 = vmatprep.mubr.f32.mxu0 0.0
        %507 = vmatmul.mubr.f32.gmra.mxu0 %v321
        %v508 = vpop.f32.mrf.mxu0
        %v509 = vadd.f32 0.0, %v508
        %v510 = vpop.f32.mrf.mxu0
        %511 = vmatprep.mubr.f32.mxu0 0.0
        %512 = vmatmul.mubr.f32.gmra.mxu0 %v324
        %v513 = vpop.f32.mrf.mxu0
        %v514 = vadd.f32 0.0, %v513
        %v515 = vpop.f32.mrf.mxu0
        %516 = vmatprep.mubr.f32.mxu0 0.0
        %517 = vmatmul.mubr.f32.gmra.mxu0 %v327
        %v518 = vpop.f32.mrf.mxu0
        %v519 = vadd.f32 0.0, %v518
        %v520 = vpop.f32.mrf.mxu0
        %521 = vmatprep.mubr.f32.mxu0 0.0
        %522 = vmatmul.mubr.f32.gmra.mxu0 %v330
        %v523 = vpop.f32.mrf.mxu0
        %v524 = vadd.f32 0.0, %v523
        %v525 = vpop.f32.mrf.mxu0
        %526 = vmatprep.mubr.f32.mxu0 0.0
        %527 = vmatmul.mubr.f32.gmra.mxu0 %v333
        %v528 = vpop.f32.mrf.mxu0
        %v529 = vadd.f32 0.0, %v528
        %v530 = vpop.f32.mrf.mxu0
        %531 = vmatprep.mubr.f32.mxu0 0.0
        %532 = vmatmul.mubr.f32.gmra.mxu0 %v336
        %v533 = vpop.f32.mrf.mxu0
        %v534 = vadd.f32 0.0, %v533
        %v535 = vpop.f32.mrf.mxu0
        %536 = vmatprep.mubr.f32.mxu0 0.0
        %537 = vmatmul.mubr.f32.gmra.mxu0 %v339
        %v538 = vpop.f32.mrf.mxu0
        %v539 = vadd.f32 0.0, %v538
        %v540 = vpop.f32.mrf.mxu0
        %541 = vmatprep.mubr.f32.mxu0 0.0
        %542 = vmatmul.mubr.f32.gmra.mxu0 %v342
        %v543 = vpop.f32.mrf.mxu0
        %v544 = vadd.f32 0.0, %v543
        %v545 = vpop.f32.mrf.mxu0
        %546 = vmatprep.mubr.f32.mxu0 0.0
        %547 = vmatmul.mubr.f32.gmra.mxu0 %v345
        %v548 = vpop.f32.mrf.mxu0
        %v549 = vadd.f32 0.0, %v548
        %v550 = vpop.f32.mrf.mxu0
        %551 = vmatprep.mubr.f32.mxu0 0.0
        %552 = vmatmul.mubr.f32.gmra.mxu0 %v348
        %v553 = vpop.f32.mrf.mxu0
        %v554 = vadd.f32 0.0, %v553
        %v555 = vpop.f32.mrf.mxu0
        %556 = vmatprep.mubr.f32.mxu0 0.0
        %557 = vmatmul.mubr.f32.gmra.mxu0 %v351
        %v558 = vpop.f32.mrf.mxu0
        %v559 = vadd.f32 0.0, %v558
        %v560 = vpop.f32.mrf.mxu0
        %561 = vmatprep.mubr.f32.mxu0 0.0
        %562 = vmatmul.mubr.f32.gmra.mxu0 %v354
        %v563 = vpop.f32.mrf.mxu0
        %v564 = vadd.f32 0.0, %v563
        %v565 = vpop.f32.mrf.mxu0
        %566 = vmatprep.mubr.f32.mxu0 0.0
        %567 = vmatmul.mubr.f32.gmra.mxu0 %v357
        %v568 = vpop.f32.mrf.mxu0
        %v569 = vadd.f32 0.0, %v568
        %v570 = vpop.f32.mrf.mxu0
        %571 = vmatprep.mubr.f32.mxu0 0.0
        %572 = vmatmul.mubr.f32.gmra.mxu0 %v360
        %v573 = vpop.f32.mrf.mxu0
        %v574 = vadd.f32 0.0, %v573
        %v575 = vpop.f32.mrf.mxu0
        %576 = vmatprep.mubr.f32.mxu0 0.0
        %577 = vmatmul.mubr.f32.gmra.mxu0 %v363
        %v578 = vpop.f32.mrf.mxu0
        %v579 = vadd.f32 0.0, %v578
        %v580 = vpop.f32.mrf.mxu0
        %581 = vmatprep.mubr.f32.mxu0 0.0
        %582 = vmatmul.mubr.f32.gmra.mxu0 %v366
        %v583 = vpop.f32.mrf.mxu0
        %v584 = vadd.f32 0.0, %v583
        %v585 = vpop.f32.mrf.mxu0
        %586 = vmatprep.mubr.f32.mxu0 0.0
        %587 = vmatmul.mubr.f32.gmra.mxu0 %v369
        %v588 = vpop.f32.mrf.mxu0
        %v589 = vadd.f32 0.0, %v588
        %v590 = vpop.f32.mrf.mxu0
        %591 = vmatprep.mubr.f32.mxu0 0.0
        %592 = vmatmul.mubr.f32.gmra.mxu0 %v372
        %v593 = vpop.f32.mrf.mxu0
        %v594 = vadd.f32 0.0, %v593
        %v595 = vpop.f32.mrf.mxu0
        %596 = vmatprep.mubr.f32.mxu0 0.0
        %597 = vmatmul.mubr.f32.gmra.mxu0 %v375
        %v598 = vpop.f32.mrf.mxu0
        %v599 = vadd.f32 0.0, %v598
        %v600 = vpop.f32.mrf.mxu0
        %601 = vdwg.mxu0
        %v603 = vlaneseq
        %v604 = vshrl.u32 %v603, 7
        %v605 = vsub.s32 0, %v604
        %v606 = vrot.slane %v279, %v605
        %v608 = vsub.f32 %v444, %v606
        %v609 = vsub.f32 %v449, %v606
        %v610 = vsub.f32 %v454, %v606
        %v611 = vsub.f32 %v459, %v606
        %v612 = vsub.f32 %v464, %v606
        %v613 = vsub.f32 %v469, %v606
        %v614 = vsub.f32 %v474, %v606
        %v615 = vsub.f32 %v479, %v606
        %v616 = vsub.f32 %v484, %v606
        %v617 = vsub.f32 %v489, %v606
        %v618 = vsub.f32 %v494, %v606
        %v619 = vsub.f32 %v499, %v606
        %v620 = vsub.f32 %v504, %v606
        %v621 = vsub.f32 %v509, %v606
        %v622 = vsub.f32 %v514, %v606
        %v623 = vsub.f32 %v519, %v606
        %v624 = vsub.f32 %v524, %v606
        %v625 = vsub.f32 %v529, %v606
        %v626 = vsub.f32 %v534, %v606
        %v627 = vsub.f32 %v539, %v606
        %v628 = vsub.f32 %v544, %v606
        %v629 = vsub.f32 %v549, %v606
        %v630 = vsub.f32 %v554, %v606
        %v631 = vsub.f32 %v559, %v606
        %v632 = vsub.f32 %v564, %v606
        %v633 = vsub.f32 %v569, %v606
        %v634 = vsub.f32 %v574, %v606
        %v635 = vsub.f32 %v579, %v606
        %v636 = vsub.f32 %v584, %v606
        %v637 = vsub.f32 %v589, %v606
        %v638 = vsub.f32 %v594, %v606
        %v639 = vsub.f32 %v599, %v606
        %v640 = vlaneseq
        %v641 = vand.u32 %v640, 127
        %642 = vmax.xlane.f32.xlu0 %v608
        %v643 = vpop.xlane.xlu0 %642
        %644 = vmax.xlane.f32.xlu0 %v609
        %v645 = vpop.xlane.xlu0 %644
        %646 = vmax.xlane.f32.xlu0 %v610
        %v647 = vpop.xlane.xlu0 %646
        %648 = vmax.xlane.f32.xlu0 %v611
        %v649 = vpop.xlane.xlu0 %648
        %650 = vmax.xlane.f32.xlu0 %v612
        %v651 = vpop.xlane.xlu0 %650
        %652 = vmax.xlane.f32.xlu0 %v613
        %v653 = vpop.xlane.xlu0 %652
        %654 = vmax.xlane.f32.xlu0 %v614
        %v655 = vpop.xlane.xlu0 %654
        %656 = vmax.xlane.f32.xlu0 %v615
        %v657 = vpop.xlane.xlu0 %656
        %658 = vmax.xlane.f32.xlu0 %v616
        %v659 = vpop.xlane.xlu0 %658
        %660 = vmax.xlane.f32.xlu0 %v617
        %v661 = vpop.xlane.xlu0 %660
        %662 = vmax.xlane.f32.xlu0 %v618
        %v663 = vpop.xlane.xlu0 %662
        %664 = vmax.xlane.f32.xlu0 %v619
        %v665 = vpop.xlane.xlu0 %664
        %666 = vmax.xlane.f32.xlu0 %v620
        %v667 = vpop.xlane.xlu0 %666
        %668 = vmax.xlane.f32.xlu0 %v621
        %v669 = vpop.xlane.xlu0 %668
        %670 = vmax.xlane.f32.xlu0 %v622
        %v671 = vpop.xlane.xlu0 %670
        %672 = vmax.xlane.f32.xlu0 %v623
        %v673 = vpop.xlane.xlu0 %672
        %674 = vmax.xlane.f32.xlu0 %v624
        %v675 = vpop.xlane.xlu0 %674
        %676 = vmax.xlane.f32.xlu0 %v625
        %v677 = vpop.xlane.xlu0 %676
        %678 = vmax.xlane.f32.xlu0 %v626
        %v679 = vpop.xlane.xlu0 %678
        %680 = vmax.xlane.f32.xlu0 %v627
        %v681 = vpop.xlane.xlu0 %680
        %682 = vmax.xlane.f32.xlu0 %v628
        %v683 = vpop.xlane.xlu0 %682
        %684 = vmax.xlane.f32.xlu0 %v629
        %v685 = vpop.xlane.xlu0 %684
        %686 = vmax.xlane.f32.xlu0 %v630
        %v687 = vpop.xlane.xlu0 %686
        %688 = vmax.xlane.f32.xlu0 %v631
        %v689 = vpop.xlane.xlu0 %688
        %690 = vmax.xlane.f32.xlu0 %v632
        %v691 = vpop.xlane.xlu0 %690
        %692 = vmax.xlane.f32.xlu0 %v633
        %v693 = vpop.xlane.xlu0 %692
        %694 = vmax.xlane.f32.xlu0 %v634
        %v695 = vpop.xlane.xlu0 %694
        %696 = vmax.xlane.f32.xlu0 %v635
        %v697 = vpop.xlane.xlu0 %696
        %698 = vmax.xlane.f32.xlu0 %v636
        %v699 = vpop.xlane.xlu0 %698
        %700 = vmax.xlane.f32.xlu0 %v637
        %v701 = vpop.xlane.xlu0 %700
        %702 = vmax.xlane.f32.xlu0 %v638
        %v703 = vpop.xlane.xlu0 %702
        %704 = vmax.xlane.f32.xlu0 %v639
        %v705 = vpop.xlane.xlu0 %704
        %vm706 = vcmp.eq.f32.partialorder %v608, %v643
        %vm707 = vcmp.eq.f32.partialorder %v609, %v645
        %vm708 = vcmp.eq.f32.partialorder %v610, %v647
        %vm709 = vcmp.eq.f32.partialorder %v611, %v649
        %vm710 = vcmp.eq.f32.partialorder %v612, %v651
        %vm711 = vcmp.eq.f32.partialorder %v613, %v653
        %vm712 = vcmp.eq.f32.partialorder %v614, %v655
        %vm713 = vcmp.eq.f32.partialorder %v615, %v657
        %vm714 = vcmp.eq.f32.partialorder %v616, %v659
        %vm715 = vcmp.eq.f32.partialorder %v617, %v661
        %vm716 = vcmp.eq.f32.partialorder %v618, %v663
        %vm717 = vcmp.eq.f32.partialorder %v619, %v665
        %vm718 = vcmp.eq.f32.partialorder %v620, %v667
        %vm719 = vcmp.eq.f32.partialorder %v621, %v669
        %vm720 = vcmp.eq.f32.partialorder %v622, %v671
        %vm721 = vcmp.eq.f32.partialorder %v623, %v673
        %vm722 = vcmp.eq.f32.partialorder %v624, %v675
        %vm723 = vcmp.eq.f32.partialorder %v625, %v677
        %vm724 = vcmp.eq.f32.partialorder %v626, %v679
        %vm725 = vcmp.eq.f32.partialorder %v627, %v681
        %vm726 = vcmp.eq.f32.partialorder %v628, %v683
        %vm727 = vcmp.eq.f32.partialorder %v629, %v685
        %vm728 = vcmp.eq.f32.partialorder %v630, %v687
        %vm729 = vcmp.eq.f32.partialorder %v631, %v689
        %vm730 = vcmp.eq.f32.partialorder %v632, %v691
        %vm731 = vcmp.eq.f32.partialorder %v633, %v693
        %vm732 = vcmp.eq.f32.partialorder %v634, %v695
        %vm733 = vcmp.eq.f32.partialorder %v635, %v697
        %vm734 = vcmp.eq.f32.partialorder %v636, %v699
        %vm735 = vcmp.eq.f32.partialorder %v637, %v701
        %vm736 = vcmp.eq.f32.partialorder %v638, %v703
        %vm737 = vcmp.eq.f32.partialorder %v639, %v705
        %v738 = vsel %vm706, %v641, 128
        %v739 = vsel %vm707, %v641, 128
        %v740 = vsel %vm708, %v641, 128
        %v741 = vsel %vm709, %v641, 128
        %v742 = vsel %vm710, %v641, 128
        %v743 = vsel %vm711, %v641, 128
        %v744 = vsel %vm712, %v641, 128
        %v745 = vsel %vm713, %v641, 128
        %v746 = vsel %vm714, %v641, 128
        %v747 = vsel %vm715, %v641, 128
        %v748 = vsel %vm716, %v641, 128
        %v749 = vsel %vm717, %v641, 128
        %v750 = vsel %vm718, %v641, 128
        %v751 = vsel %vm719, %v641, 128
        %v752 = vsel %vm720, %v641, 128
        %v753 = vsel %vm721, %v641, 128
        %v754 = vsel %vm722, %v641, 128
        %v755 = vsel %vm723, %v641, 128
        %v756 = vsel %vm724, %v641, 128
        %v757 = vsel %vm725, %v641, 128
        %v758 = vsel %vm726, %v641, 128
        %v759 = vsel %vm727, %v641, 128
        %v760 = vsel %vm728, %v641, 128
        %v761 = vsel %vm729, %v641, 128
        %v762 = vsel %vm730, %v641, 128
        %v763 = vsel %vm731, %v641, 128
        %v764 = vsel %vm732, %v641, 128
        %v765 = vsel %vm733, %v641, 128
        %v766 = vsel %vm734, %v641, 128
        %v767 = vsel %vm735, %v641, 128
        %v768 = vsel %vm736, %v641, 128
        %v769 = vsel %vm737, %v641, 128
        %v770 = vand.u32 %v738, 65535
        %v771 = vshra.s32 %v738, 16
        %v772 = vcvt.s32.f32 %v770
        %v773 = vcvt.s32.f32 %v771
        %774 = vmin.xlane.f32.xlu0 %v773
        %v775 = vpop.xlane.xlu0 %774
        %vm776 = vcmp.eq.f32.partialorder %v773, %v775
        %v777 = vsel %vm776, %v772, inf
        %778 = vmin.xlane.f32.xlu0 %v777
        %v779 = vpop.xlane.xlu0 %778
        %v780 = vcvt.f32.s32 %v779
        %v781 = vcvt.f32.s32 %v775
        %v782 = vshll.u32 %v781, 16
        %v783 = vadd.s32 %v782, %v780
        %v784 = vand.u32 %v739, 65535
        %v785 = vshra.s32 %v739, 16
        %v786 = vcvt.s32.f32 %v784
        %v787 = vcvt.s32.f32 %v785
        %788 = vmin.xlane.f32.xlu0 %v787
        %v789 = vpop.xlane.xlu0 %788
        %vm790 = vcmp.eq.f32.partialorder %v787, %v789
        %v791 = vsel %vm790, %v786, inf
        %792 = vmin.xlane.f32.xlu0 %v791
        %v793 = vpop.xlane.xlu0 %792
        %v794 = vcvt.f32.s32 %v793
        %v795 = vcvt.f32.s32 %v789
        %v796 = vshll.u32 %v795, 16
        %v797 = vadd.s32 %v796, %v794
        %v798 = vand.u32 %v740, 65535
        %v799 = vshra.s32 %v740, 16
        %v800 = vcvt.s32.f32 %v798
        %v801 = vcvt.s32.f32 %v799
        %802 = vmin.xlane.f32.xlu0 %v801
        %v803 = vpop.xlane.xlu0 %802
        %vm804 = vcmp.eq.f32.partialorder %v801, %v803
        %v805 = vsel %vm804, %v800, inf
        %806 = vmin.xlane.f32.xlu0 %v805
        %v807 = vpop.xlane.xlu0 %806
        %v808 = vcvt.f32.s32 %v807
        %v809 = vcvt.f32.s32 %v803
        %v810 = vshll.u32 %v809, 16
        %v811 = vadd.s32 %v810, %v808
        %v812 = vand.u32 %v741, 65535
        %v813 = vshra.s32 %v741, 16
        %v814 = vcvt.s32.f32 %v812
        %v815 = vcvt.s32.f32 %v813
        %816 = vmin.xlane.f32.xlu0 %v815
        %v817 = vpop.xlane.xlu0 %816
        %vm818 = vcmp.eq.f32.partialorder %v815, %v817
        %v819 = vsel %vm818, %v814, inf
        %820 = vmin.xlane.f32.xlu0 %v819
        %v821 = vpop.xlane.xlu0 %820
        %v822 = vcvt.f32.s32 %v821
        %v823 = vcvt.f32.s32 %v817
        %v824 = vshll.u32 %v823, 16
        %v825 = vadd.s32 %v824, %v822
        %v826 = vand.u32 %v742, 65535
        %v827 = vshra.s32 %v742, 16
        %v828 = vcvt.s32.f32 %v826
        %v829 = vcvt.s32.f32 %v827
        %830 = vmin.xlane.f32.xlu0 %v829
        %v831 = vpop.xlane.xlu0 %830
        %vm832 = vcmp.eq.f32.partialorder %v829, %v831
        %v833 = vsel %vm832, %v828, inf
        %834 = vmin.xlane.f32.xlu0 %v833
        %v835 = vpop.xlane.xlu0 %834
        %v836 = vcvt.f32.s32 %v835
        %v837 = vcvt.f32.s32 %v831
        %v838 = vshll.u32 %v837, 16
        %v839 = vadd.s32 %v838, %v836
        %v840 = vand.u32 %v743, 65535
        %v841 = vshra.s32 %v743, 16
        %v842 = vcvt.s32.f32 %v840
        %v843 = vcvt.s32.f32 %v841
        %844 = vmin.xlane.f32.xlu0 %v843
        %v845 = vpop.xlane.xlu0 %844
        %vm846 = vcmp.eq.f32.partialorder %v843, %v845
        %v847 = vsel %vm846, %v842, inf
        %848 = vmin.xlane.f32.xlu0 %v847
        %v849 = vpop.xlane.xlu0 %848
        %v850 = vcvt.f32.s32 %v849
        %v851 = vcvt.f32.s32 %v845
        %v852 = vshll.u32 %v851, 16
        %v853 = vadd.s32 %v852, %v850
        %v854 = vand.u32 %v744, 65535
        %v855 = vshra.s32 %v744, 16
        %v856 = vcvt.s32.f32 %v854
        %v857 = vcvt.s32.f32 %v855
        %858 = vmin.xlane.f32.xlu0 %v857
        %v859 = vpop.xlane.xlu0 %858
        %vm860 = vcmp.eq.f32.partialorder %v857, %v859
        %v861 = vsel %vm860, %v856, inf
        %862 = vmin.xlane.f32.xlu0 %v861
        %v863 = vpop.xlane.xlu0 %862
        %v864 = vcvt.f32.s32 %v863
        %v865 = vcvt.f32.s32 %v859
        %v866 = vshll.u32 %v865, 16
        %v867 = vadd.s32 %v866, %v864
        %v868 = vand.u32 %v745, 65535
        %v869 = vshra.s32 %v745, 16
        %v870 = vcvt.s32.f32 %v868
        %v871 = vcvt.s32.f32 %v869
        %872 = vmin.xlane.f32.xlu0 %v871
        %v873 = vpop.xlane.xlu0 %872
        %vm874 = vcmp.eq.f32.partialorder %v871, %v873
        %v875 = vsel %vm874, %v870, inf
        %876 = vmin.xlane.f32.xlu0 %v875
        %v877 = vpop.xlane.xlu0 %876
        %v878 = vcvt.f32.s32 %v877
        %v879 = vcvt.f32.s32 %v873
        %v880 = vshll.u32 %v879, 16
        %v881 = vadd.s32 %v880, %v878
        %v882 = vand.u32 %v746, 65535
        %v883 = vshra.s32 %v746, 16
        %v884 = vcvt.s32.f32 %v882
        %v885 = vcvt.s32.f32 %v883
        %886 = vmin.xlane.f32.xlu0 %v885
        %v887 = vpop.xlane.xlu0 %886
        %vm888 = vcmp.eq.f32.partialorder %v885, %v887
        %v889 = vsel %vm888, %v884, inf
        %890 = vmin.xlane.f32.xlu0 %v889
        %v891 = vpop.xlane.xlu0 %890
        %v892 = vcvt.f32.s32 %v891
        %v893 = vcvt.f32.s32 %v887
        %v894 = vshll.u32 %v893, 16
        %v895 = vadd.s32 %v894, %v892
        %v896 = vand.u32 %v747, 65535
        %v897 = vshra.s32 %v747, 16
        %v898 = vcvt.s32.f32 %v896
        %v899 = vcvt.s32.f32 %v897
        %900 = vmin.xlane.f32.xlu0 %v899
        %v901 = vpop.xlane.xlu0 %900
        %vm902 = vcmp.eq.f32.partialorder %v899, %v901
        %v903 = vsel %vm902, %v898, inf
        %904 = vmin.xlane.f32.xlu0 %v903
        %v905 = vpop.xlane.xlu0 %904
        %v906 = vcvt.f32.s32 %v905
        %v907 = vcvt.f32.s32 %v901
        %v908 = vshll.u32 %v907, 16
        %v909 = vadd.s32 %v908, %v906
        %v910 = vand.u32 %v748, 65535
        %v911 = vshra.s32 %v748, 16
        %v912 = vcvt.s32.f32 %v910
        %v913 = vcvt.s32.f32 %v911
        %914 = vmin.xlane.f32.xlu0 %v913
        %v915 = vpop.xlane.xlu0 %914
        %vm916 = vcmp.eq.f32.partialorder %v913, %v915
        %v917 = vsel %vm916, %v912, inf
        %918 = vmin.xlane.f32.xlu0 %v917
        %v919 = vpop.xlane.xlu0 %918
        %v920 = vcvt.f32.s32 %v919
        %v921 = vcvt.f32.s32 %v915
        %v922 = vshll.u32 %v921, 16
        %v923 = vadd.s32 %v922, %v920
        %v924 = vand.u32 %v749, 65535
        %v925 = vshra.s32 %v749, 16
        %v926 = vcvt.s32.f32 %v924
        %v927 = vcvt.s32.f32 %v925
        %928 = vmin.xlane.f32.xlu0 %v927
        %v929 = vpop.xlane.xlu0 %928
        %vm930 = vcmp.eq.f32.partialorder %v927, %v929
        %v931 = vsel %vm930, %v926, inf
        %932 = vmin.xlane.f32.xlu0 %v931
        %v933 = vpop.xlane.xlu0 %932
        %v934 = vcvt.f32.s32 %v933
        %v935 = vcvt.f32.s32 %v929
        %v936 = vshll.u32 %v935, 16
        %v937 = vadd.s32 %v936, %v934
        %v938 = vand.u32 %v750, 65535
        %v939 = vshra.s32 %v750, 16
        %v940 = vcvt.s32.f32 %v938
        %v941 = vcvt.s32.f32 %v939
        %942 = vmin.xlane.f32.xlu0 %v941
        %v943 = vpop.xlane.xlu0 %942
        %vm944 = vcmp.eq.f32.partialorder %v941, %v943
        %v945 = vsel %vm944, %v940, inf
        %946 = vmin.xlane.f32.xlu0 %v945
        %v947 = vpop.xlane.xlu0 %946
        %v948 = vcvt.f32.s32 %v947
        %v949 = vcvt.f32.s32 %v943
        %v950 = vshll.u32 %v949, 16
        %v951 = vadd.s32 %v950, %v948
        %v952 = vand.u32 %v751, 65535
        %v953 = vshra.s32 %v751, 16
        %v954 = vcvt.s32.f32 %v952
        %v955 = vcvt.s32.f32 %v953
        %956 = vmin.xlane.f32.xlu0 %v955
        %v957 = vpop.xlane.xlu0 %956
        %vm958 = vcmp.eq.f32.partialorder %v955, %v957
        %v959 = vsel %vm958, %v954, inf
        %960 = vmin.xlane.f32.xlu0 %v959
        %v961 = vpop.xlane.xlu0 %960
        %v962 = vcvt.f32.s32 %v961
        %v963 = vcvt.f32.s32 %v957
        %v964 = vshll.u32 %v963, 16
        %v965 = vadd.s32 %v964, %v962
        %v966 = vand.u32 %v752, 65535
        %v967 = vshra.s32 %v752, 16
        %v968 = vcvt.s32.f32 %v966
        %v969 = vcvt.s32.f32 %v967
        %970 = vmin.xlane.f32.xlu0 %v969
        %v971 = vpop.xlane.xlu0 %970
        %vm972 = vcmp.eq.f32.partialorder %v969, %v971
        %v973 = vsel %vm972, %v968, inf
        %974 = vmin.xlane.f32.xlu0 %v973
        %v975 = vpop.xlane.xlu0 %974
        %v976 = vcvt.f32.s32 %v975
        %v977 = vcvt.f32.s32 %v971
        %v978 = vshll.u32 %v977, 16
        %v979 = vadd.s32 %v978, %v976
        %v980 = vand.u32 %v753, 65535
        %v981 = vshra.s32 %v753, 16
        %v982 = vcvt.s32.f32 %v980
        %v983 = vcvt.s32.f32 %v981
        %984 = vmin.xlane.f32.xlu0 %v983
        %v985 = vpop.xlane.xlu0 %984
        %vm986 = vcmp.eq.f32.partialorder %v983, %v985
        %v987 = vsel %vm986, %v982, inf
        %988 = vmin.xlane.f32.xlu0 %v987
        %v989 = vpop.xlane.xlu0 %988
        %v990 = vcvt.f32.s32 %v989
        %v991 = vcvt.f32.s32 %v985
        %v992 = vshll.u32 %v991, 16
        %v993 = vadd.s32 %v992, %v990
        %v994 = vand.u32 %v754, 65535
        %v995 = vshra.s32 %v754, 16
        %v996 = vcvt.s32.f32 %v994
        %v997 = vcvt.s32.f32 %v995
        %998 = vmin.xlane.f32.xlu0 %v997
        %v999 = vpop.xlane.xlu0 %998
        %vm1000 = vcmp.eq.f32.partialorder %v997, %v999
        %v1001 = vsel %vm1000, %v996, inf
        %1002 = vmin.xlane.f32.xlu0 %v1001
        %v1003 = vpop.xlane.xlu0 %1002
        %v1004 = vcvt.f32.s32 %v1003
        %v1005 = vcvt.f32.s32 %v999
        %v1006 = vshll.u32 %v1005, 16
        %v1007 = vadd.s32 %v1006, %v1004
        %v1008 = vand.u32 %v755, 65535
        %v1009 = vshra.s32 %v755, 16
        %v1010 = vcvt.s32.f32 %v1008
        %v1011 = vcvt.s32.f32 %v1009
        %1012 = vmin.xlane.f32.xlu0 %v1011
        %v1013 = vpop.xlane.xlu0 %1012
        %vm1014 = vcmp.eq.f32.partialorder %v1011, %v1013
        %v1015 = vsel %vm1014, %v1010, inf
        %1016 = vmin.xlane.f32.xlu0 %v1015
        %v1017 = vpop.xlane.xlu0 %1016
        %v1018 = vcvt.f32.s32 %v1017
        %v1019 = vcvt.f32.s32 %v1013
        %v1020 = vshll.u32 %v1019, 16
        %v1021 = vadd.s32 %v1020, %v1018
        %v1022 = vand.u32 %v756, 65535
        %v1023 = vshra.s32 %v756, 16
        %v1024 = vcvt.s32.f32 %v1022
        %v1025 = vcvt.s32.f32 %v1023
        %1026 = vmin.xlane.f32.xlu0 %v1025
        %v1027 = vpop.xlane.xlu0 %1026
        %vm1028 = vcmp.eq.f32.partialorder %v1025, %v1027
        %v1029 = vsel %vm1028, %v1024, inf
        %1030 = vmin.xlane.f32.xlu0 %v1029
        %v1031 = vpop.xlane.xlu0 %1030
        %v1032 = vcvt.f32.s32 %v1031
        %v1033 = vcvt.f32.s32 %v1027
        %v1034 = vshll.u32 %v1033, 16
        %v1035 = vadd.s32 %v1034, %v1032
        %v1036 = vand.u32 %v757, 65535
        %v1037 = vshra.s32 %v757, 16
        %v1038 = vcvt.s32.f32 %v1036
        %v1039 = vcvt.s32.f32 %v1037
        %1040 = vmin.xlane.f32.xlu0 %v1039
        %v1041 = vpop.xlane.xlu0 %1040
        %vm1042 = vcmp.eq.f32.partialorder %v1039, %v1041
        %v1043 = vsel %vm1042, %v1038, inf
        %1044 = vmin.xlane.f32.xlu0 %v1043
        %v1045 = vpop.xlane.xlu0 %1044
        %v1046 = vcvt.f32.s32 %v1045
        %v1047 = vcvt.f32.s32 %v1041
        %v1048 = vshll.u32 %v1047, 16
        %v1049 = vadd.s32 %v1048, %v1046
        %v1050 = vand.u32 %v758, 65535
        %v1051 = vshra.s32 %v758, 16
        %v1052 = vcvt.s32.f32 %v1050
        %v1053 = vcvt.s32.f32 %v1051
        %1054 = vmin.xlane.f32.xlu0 %v1053
        %v1055 = vpop.xlane.xlu0 %1054
        %vm1056 = vcmp.eq.f32.partialorder %v1053, %v1055
        %v1057 = vsel %vm1056, %v1052, inf
        %1058 = vmin.xlane.f32.xlu0 %v1057
        %v1059 = vpop.xlane.xlu0 %1058
        %v1060 = vcvt.f32.s32 %v1059
        %v1061 = vcvt.f32.s32 %v1055
        %v1062 = vshll.u32 %v1061, 16
        %v1063 = vadd.s32 %v1062, %v1060
        %v1064 = vand.u32 %v759, 65535
        %v1065 = vshra.s32 %v759, 16
        %v1066 = vcvt.s32.f32 %v1064
        %v1067 = vcvt.s32.f32 %v1065
        %1068 = vmin.xlane.f32.xlu0 %v1067
        %v1069 = vpop.xlane.xlu0 %1068
        %vm1070 = vcmp.eq.f32.partialorder %v1067, %v1069
        %v1071 = vsel %vm1070, %v1066, inf
        %1072 = vmin.xlane.f32.xlu0 %v1071
        %v1073 = vpop.xlane.xlu0 %1072
        %v1074 = vcvt.f32.s32 %v1073
        %v1075 = vcvt.f32.s32 %v1069
        %v1076 = vshll.u32 %v1075, 16
        %v1077 = vadd.s32 %v1076, %v1074
        %v1078 = vand.u32 %v760, 65535
        %v1079 = vshra.s32 %v760, 16
        %v1080 = vcvt.s32.f32 %v1078
        %v1081 = vcvt.s32.f32 %v1079
        %1082 = vmin.xlane.f32.xlu0 %v1081
        %v1083 = vpop.xlane.xlu0 %1082
        %vm1084 = vcmp.eq.f32.partialorder %v1081, %v1083
        %v1085 = vsel %vm1084, %v1080, inf
        %1086 = vmin.xlane.f32.xlu0 %v1085
        %v1087 = vpop.xlane.xlu0 %1086
        %v1088 = vcvt.f32.s32 %v1087
        %v1089 = vcvt.f32.s32 %v1083
        %v1090 = vshll.u32 %v1089, 16
        %v1091 = vadd.s32 %v1090, %v1088
        %v1092 = vand.u32 %v761, 65535
        %v1093 = vshra.s32 %v761, 16
        %v1094 = vcvt.s32.f32 %v1092
        %v1095 = vcvt.s32.f32 %v1093
        %1096 = vmin.xlane.f32.xlu0 %v1095
        %v1097 = vpop.xlane.xlu0 %1096
        %vm1098 = vcmp.eq.f32.partialorder %v1095, %v1097
        %v1099 = vsel %vm1098, %v1094, inf
        %1100 = vmin.xlane.f32.xlu0 %v1099
        %v1101 = vpop.xlane.xlu0 %1100
        %v1102 = vcvt.f32.s32 %v1101
        %v1103 = vcvt.f32.s32 %v1097
        %v1104 = vshll.u32 %v1103, 16
        %v1105 = vadd.s32 %v1104, %v1102
        %v1106 = vand.u32 %v762, 65535
        %v1107 = vshra.s32 %v762, 16
        %v1108 = vcvt.s32.f32 %v1106
        %v1109 = vcvt.s32.f32 %v1107
        %1110 = vmin.xlane.f32.xlu0 %v1109
        %v1111 = vpop.xlane.xlu0 %1110
        %vm1112 = vcmp.eq.f32.partialorder %v1109, %v1111
        %v1113 = vsel %vm1112, %v1108, inf
        %1114 = vmin.xlane.f32.xlu0 %v1113
        %v1115 = vpop.xlane.xlu0 %1114
        %v1116 = vcvt.f32.s32 %v1115
        %v1117 = vcvt.f32.s32 %v1111
        %v1118 = vshll.u32 %v1117, 16
        %v1119 = vadd.s32 %v1118, %v1116
        %v1120 = vand.u32 %v763, 65535
        %v1121 = vshra.s32 %v763, 16
        %v1122 = vcvt.s32.f32 %v1120
        %v1123 = vcvt.s32.f32 %v1121
        %1124 = vmin.xlane.f32.xlu0 %v1123
        %v1125 = vpop.xlane.xlu0 %1124
        %vm1126 = vcmp.eq.f32.partialorder %v1123, %v1125
        %v1127 = vsel %vm1126, %v1122, inf
        %1128 = vmin.xlane.f32.xlu0 %v1127
        %v1129 = vpop.xlane.xlu0 %1128
        %v1130 = vcvt.f32.s32 %v1129
        %v1131 = vcvt.f32.s32 %v1125
        %v1132 = vshll.u32 %v1131, 16
        %v1133 = vadd.s32 %v1132, %v1130
        %v1134 = vand.u32 %v764, 65535
        %v1135 = vshra.s32 %v764, 16
        %v1136 = vcvt.s32.f32 %v1134
        %v1137 = vcvt.s32.f32 %v1135
        %1138 = vmin.xlane.f32.xlu0 %v1137
        %v1139 = vpop.xlane.xlu0 %1138
        %vm1140 = vcmp.eq.f32.partialorder %v1137, %v1139
        %v1141 = vsel %vm1140, %v1136, inf
        %1142 = vmin.xlane.f32.xlu0 %v1141
        %v1143 = vpop.xlane.xlu0 %1142
        %v1144 = vcvt.f32.s32 %v1143
        %v1145 = vcvt.f32.s32 %v1139
        %v1146 = vshll.u32 %v1145, 16
        %v1147 = vadd.s32 %v1146, %v1144
        %v1148 = vand.u32 %v765, 65535
        %v1149 = vshra.s32 %v765, 16
        %v1150 = vcvt.s32.f32 %v1148
        %v1151 = vcvt.s32.f32 %v1149
        %1152 = vmin.xlane.f32.xlu0 %v1151
        %v1153 = vpop.xlane.xlu0 %1152
        %vm1154 = vcmp.eq.f32.partialorder %v1151, %v1153
        %v1155 = vsel %vm1154, %v1150, inf
        %1156 = vmin.xlane.f32.xlu0 %v1155
        %v1157 = vpop.xlane.xlu0 %1156
        %v1158 = vcvt.f32.s32 %v1157
        %v1159 = vcvt.f32.s32 %v1153
        %v1160 = vshll.u32 %v1159, 16
        %v1161 = vadd.s32 %v1160, %v1158
        %v1162 = vand.u32 %v766, 65535
        %v1163 = vshra.s32 %v766, 16
        %v1164 = vcvt.s32.f32 %v1162
        %v1165 = vcvt.s32.f32 %v1163
        %1166 = vmin.xlane.f32.xlu0 %v1165
        %v1167 = vpop.xlane.xlu0 %1166
        %vm1168 = vcmp.eq.f32.partialorder %v1165, %v1167
        %v1169 = vsel %vm1168, %v1164, inf
        %1170 = vmin.xlane.f32.xlu0 %v1169
        %v1171 = vpop.xlane.xlu0 %1170
        %v1172 = vcvt.f32.s32 %v1171
        %v1173 = vcvt.f32.s32 %v1167
        %v1174 = vshll.u32 %v1173, 16
        %v1175 = vadd.s32 %v1174, %v1172
        %v1176 = vand.u32 %v767, 65535
        %v1177 = vshra.s32 %v767, 16
        %v1178 = vcvt.s32.f32 %v1176
        %v1179 = vcvt.s32.f32 %v1177
        %1180 = vmin.xlane.f32.xlu0 %v1179
        %v1181 = vpop.xlane.xlu0 %1180
        %vm1182 = vcmp.eq.f32.partialorder %v1179, %v1181
        %v1183 = vsel %vm1182, %v1178, inf
        %1184 = vmin.xlane.f32.xlu0 %v1183
        %v1185 = vpop.xlane.xlu0 %1184
        %v1186 = vcvt.f32.s32 %v1185
        %v1187 = vcvt.f32.s32 %v1181
        %v1188 = vshll.u32 %v1187, 16
        %v1189 = vadd.s32 %v1188, %v1186
        %v1190 = vand.u32 %v768, 65535
        %v1191 = vshra.s32 %v768, 16
        %v1192 = vcvt.s32.f32 %v1190
        %v1193 = vcvt.s32.f32 %v1191
        %1194 = vmin.xlane.f32.xlu0 %v1193
        %v1195 = vpop.xlane.xlu0 %1194
        %vm1196 = vcmp.eq.f32.partialorder %v1193, %v1195
        %v1197 = vsel %vm1196, %v1192, inf
        %1198 = vmin.xlane.f32.xlu0 %v1197
        %v1199 = vpop.xlane.xlu0 %1198
        %v1200 = vcvt.f32.s32 %v1199
        %v1201 = vcvt.f32.s32 %v1195
        %v1202 = vshll.u32 %v1201, 16
        %v1203 = vadd.s32 %v1202, %v1200
        %v1204 = vand.u32 %v769, 65535
        %v1205 = vshra.s32 %v769, 16
        %v1206 = vcvt.s32.f32 %v1204
        %v1207 = vcvt.s32.f32 %v1205
        %1208 = vmin.xlane.f32.xlu0 %v1207
        %v1209 = vpop.xlane.xlu0 %1208
        %vm1210 = vcmp.eq.f32.partialorder %v1207, %v1209
        %v1211 = vsel %vm1210, %v1206, inf
        %1212 = vmin.xlane.f32.xlu0 %v1211
        %v1213 = vpop.xlane.xlu0 %1212
        %v1214 = vcvt.f32.s32 %v1213
        %v1215 = vcvt.f32.s32 %v1209
        %v1216 = vshll.u32 %v1215, 16
        %v1217 = vadd.s32 %v1216, %v1214
        %vm1218 = vcmp.eq.s32.totalorder %v641, %v783
        %vm1219 = vcmp.eq.s32.totalorder %v641, %v797
        %vm1220 = vcmp.eq.s32.totalorder %v641, %v811
        %vm1221 = vcmp.eq.s32.totalorder %v641, %v825
        %vm1222 = vcmp.eq.s32.totalorder %v641, %v839
        %vm1223 = vcmp.eq.s32.totalorder %v641, %v853
        %vm1224 = vcmp.eq.s32.totalorder %v641, %v867
        %vm1225 = vcmp.eq.s32.totalorder %v641, %v881
        %vm1226 = vcmp.eq.s32.totalorder %v641, %v895
        %vm1227 = vcmp.eq.s32.totalorder %v641, %v909
        %vm1228 = vcmp.eq.s32.totalorder %v641, %v923
        %vm1229 = vcmp.eq.s32.totalorder %v641, %v937
        %vm1230 = vcmp.eq.s32.totalorder %v641, %v951
        %vm1231 = vcmp.eq.s32.totalorder %v641, %v965
        %vm1232 = vcmp.eq.s32.totalorder %v641, %v979
        %vm1233 = vcmp.eq.s32.totalorder %v641, %v993
        %vm1234 = vcmp.eq.s32.totalorder %v641, %v1007
        %vm1235 = vcmp.eq.s32.totalorder %v641, %v1021
        %vm1236 = vcmp.eq.s32.totalorder %v641, %v1035
        %vm1237 = vcmp.eq.s32.totalorder %v641, %v1049
        %vm1238 = vcmp.eq.s32.totalorder %v641, %v1063
        %vm1239 = vcmp.eq.s32.totalorder %v641, %v1077
        %vm1240 = vcmp.eq.s32.totalorder %v641, %v1091
        %vm1241 = vcmp.eq.s32.totalorder %v641, %v1105
        %vm1242 = vcmp.eq.s32.totalorder %v641, %v1119
        %vm1243 = vcmp.eq.s32.totalorder %v641, %v1133
        %vm1244 = vcmp.eq.s32.totalorder %v641, %v1147
        %vm1245 = vcmp.eq.s32.totalorder %v641, %v1161
        %vm1246 = vcmp.eq.s32.totalorder %v641, %v1175
        %vm1247 = vcmp.eq.s32.totalorder %v641, %v1189
        %vm1248 = vcmp.eq.s32.totalorder %v641, %v1203
        %vm1249 = vcmp.eq.s32.totalorder %v641, %v1217
        %v1250 = vsel %vm1218, 1, 0
        %v1251 = vsel %vm1219, 1, 0
        %v1252 = vsel %vm1220, 1, 0
        %v1253 = vsel %vm1221, 1, 0
        %v1254 = vsel %vm1222, 1, 0
        %v1255 = vsel %vm1223, 1, 0
        %v1256 = vsel %vm1224, 1, 0
        %v1257 = vsel %vm1225, 1, 0
        %v1258 = vsel %vm1226, 1, 0
        %v1259 = vsel %vm1227, 1, 0
        %v1260 = vsel %vm1228, 1, 0
        %v1261 = vsel %vm1229, 1, 0
        %v1262 = vsel %vm1230, 1, 0
        %v1263 = vsel %vm1231, 1, 0
        %v1264 = vsel %vm1232, 1, 0
        %v1265 = vsel %vm1233, 1, 0
        %v1266 = vsel %vm1234, 1, 0
        %v1267 = vsel %vm1235, 1, 0
        %v1268 = vsel %vm1236, 1, 0
        %v1269 = vsel %vm1237, 1, 0
        %v1270 = vsel %vm1238, 1, 0
        %v1271 = vsel %vm1239, 1, 0
        %v1272 = vsel %vm1240, 1, 0
        %v1273 = vsel %vm1241, 1, 0
        %v1274 = vsel %vm1242, 1, 0
        %v1275 = vsel %vm1243, 1, 0
        %v1276 = vsel %vm1244, 1, 0
        %v1277 = vsel %vm1245, 1, 0
        %v1278 = vsel %vm1246, 1, 0
        %v1279 = vsel %vm1247, 1, 0
        %v1280 = vsel %vm1248, 1, 0
        %v1281 = vsel %vm1249, 1, 0
        %v1282 = vcvt.s32.f32 %v1250
        %v1283 = vcvt.s32.f32 %v1251
        %v1284 = vcvt.s32.f32 %v1252
        %v1285 = vcvt.s32.f32 %v1253
        %v1286 = vcvt.s32.f32 %v1254
        %v1287 = vcvt.s32.f32 %v1255
        %v1288 = vcvt.s32.f32 %v1256
        %v1289 = vcvt.s32.f32 %v1257
        %v1290 = vcvt.s32.f32 %v1258
        %v1291 = vcvt.s32.f32 %v1259
        %v1292 = vcvt.s32.f32 %v1260
        %v1293 = vcvt.s32.f32 %v1261
        %v1294 = vcvt.s32.f32 %v1262
        %v1295 = vcvt.s32.f32 %v1263
        %v1296 = vcvt.s32.f32 %v1264
        %v1297 = vcvt.s32.f32 %v1265
        %v1298 = vcvt.s32.f32 %v1266
        %v1299 = vcvt.s32.f32 %v1267
        %v1300 = vcvt.s32.f32 %v1268
        %v1301 = vcvt.s32.f32 %v1269
        %v1302 = vcvt.s32.f32 %v1270
        %v1303 = vcvt.s32.f32 %v1271
        %v1304 = vcvt.s32.f32 %v1272
        %v1305 = vcvt.s32.f32 %v1273
        %v1306 = vcvt.s32.f32 %v1274
        %v1307 = vcvt.s32.f32 %v1275
        %v1308 = vcvt.s32.f32 %v1276
        %v1309 = vcvt.s32.f32 %v1277
        %v1310 = vcvt.s32.f32 %v1278
        %v1311 = vcvt.s32.f32 %v1279
        %v1312 = vcvt.s32.f32 %v1280
        %v1313 = vcvt.s32.f32 %v1281
        %v1314 = vld [vmem:[%s2] sm:$0xff]
        %v1315 = vld [vmem:[%s2 + $0x8] sm:$0xff]
        %v1316 = vld [vmem:[%s2 + $0x10] sm:$0xff]
        %v1317 = vld [vmem:[%s2 + $0x18] sm:$0xff]
        %v1318 = vld [vmem:[%s2 + $0x20] sm:$0xff]
        %v1319 = vld [vmem:[%s2 + $0x28] sm:$0xff]
        %v1320 = vld [vmem:[%s2 + $0x30] sm:$0xff]
        %v1321 = vld [vmem:[%s2 + $0x38] sm:$0xff]
        %v1322 = vld [vmem:[%s2 + $0x40] sm:$0xff]
        %v1323 = vld [vmem:[%s2 + $0x48] sm:$0xff]
        %v1324 = vld [vmem:[%s2 + $0x50] sm:$0xff]
        %v1325 = vld [vmem:[%s2 + $0x58] sm:$0xff]
        %v1326 = vld [vmem:[%s2 + $0x60] sm:$0xff]
        %v1327 = vld [vmem:[%s2 + $0x68] sm:$0xff]
        %v1328 = vld [vmem:[%s2 + $0x70] sm:$0xff]
        %v1329 = vld [vmem:[%s2 + $0x78] sm:$0xff]
        %1330 = vmatprep.subr.mxu0 0.0
        %1331 = vmatpush1.msra.mxu0 %v1329
        %1332 = vmatprep.subr.mxu0 0.0
        %1333 = vmatpush1.msra.mxu0 %v1328
        %1334 = vmatprep.subr.mxu0 0.0
        %1335 = vmatpush1.msra.mxu0 %v1327
        %1336 = vmatprep.subr.mxu0 0.0
        %1337 = vmatpush1.msra.mxu0 %v1326
        %1338 = vmatprep.subr.mxu0 0.0
        %1339 = vmatpush1.msra.mxu0 %v1325
        %1340 = vmatprep.subr.mxu0 0.0
        %1341 = vmatpush1.msra.mxu0 %v1324
        %1342 = vmatprep.subr.mxu0 0.0
        %1343 = vmatpush1.msra.mxu0 %v1323
        %1344 = vmatprep.subr.mxu0 0.0
        %1345 = vmatpush1.msra.mxu0 %v1322
        %1346 = vmatprep.subr.mxu0 0.0
        %1347 = vmatpush1.msra.mxu0 %v1321
        %1348 = vmatprep.subr.mxu0 0.0
        %1349 = vmatpush1.msra.mxu0 %v1320
        %1350 = vmatprep.subr.mxu0 0.0
        %1351 = vmatpush1.msra.mxu0 %v1319
        %1352 = vmatprep.subr.mxu0 0.0
        %1353 = vmatpush1.msra.mxu0 %v1318
        %1354 = vmatprep.subr.mxu0 0.0
        %1355 = vmatpush1.msra.mxu0 %v1317
        %1356 = vmatprep.subr.mxu0 0.0
        %1357 = vmatpush1.msra.mxu0 %v1316
        %1358 = vmatprep.subr.mxu0 0.0
        %1359 = vmatpush1.msra.mxu0 %v1315
        %1360 = vmatprep.subr.mxu0 0.0
        %1361 = vmatpush1.msra.mxu0 %v1314
        %1362 = vmatprep.subr.mxu0 0.0
        %1363 = vmatpush2.msra.mxu0 0.0
        %1364 = vmatprep.subr.mxu0 0.0
        %1365 = vmatpush2.msra.mxu0 0.0
        %1366 = vmatprep.subr.mxu0 0.0
        %1367 = vmatpush2.msra.mxu0 0.0
        %1368 = vmatprep.subr.mxu0 0.0
        %1369 = vmatpush2.msra.mxu0 0.0
        %1370 = vmatprep.subr.mxu0 0.0
        %1371 = vmatpush2.msra.mxu0 0.0
        %1372 = vmatprep.subr.mxu0 0.0
        %1373 = vmatpush2.msra.mxu0 0.0
        %1374 = vmatprep.subr.mxu0 0.0
        %1375 = vmatpush2.msra.mxu0 0.0
        %1376 = vmatprep.subr.mxu0 0.0
        %1377 = vmatpush2.msra.mxu0 0.0
        %1378 = vmatprep.subr.mxu0 0.0
        %1379 = vmatpush2.msra.mxu0 0.0
        %1380 = vmatprep.subr.mxu0 0.0
        %1381 = vmatpush2.msra.mxu0 0.0
        %1382 = vmatprep.subr.mxu0 0.0
        %1383 = vmatpush2.msra.mxu0 0.0
        %1384 = vmatprep.subr.mxu0 0.0
        %1385 = vmatpush2.msra.mxu0 0.0
        %1386 = vmatprep.subr.mxu0 0.0
        %1387 = vmatpush2.msra.mxu0 0.0
        %1388 = vmatprep.subr.mxu0 0.0
        %1389 = vmatpush2.msra.mxu0 0.0
        %1390 = vmatprep.subr.mxu0 0.0
        %1391 = vmatpush2.msra.mxu0 0.0
        %1392 = vmatprep.subr.mxu0 0.0
        %1393 = vmatpush2.msra.mxu0 0.0
        %1394 = vmatprep.mubr.f32.mxu0 0.0
        %1395 = vmatmul.mubr.f32.gmra.mxu0 %v1282
        %v1396 = vpop.f32.mrf.mxu0
        %v1397 = vadd.f32 0.0, %v1396
        %v1398 = vpop.f32.mrf.mxu0
        %1399 = vmatprep.mubr.f32.mxu0 0.0
        %1400 = vmatmul.mubr.f32.gmra.mxu0 %v1283
        %v1401 = vpop.f32.mrf.mxu0
        %v1402 = vadd.f32 0.0, %v1401
        %v1403 = vpop.f32.mrf.mxu0
        %1404 = vmatprep.mubr.f32.mxu0 0.0
        %1405 = vmatmul.mubr.f32.gmra.mxu0 %v1284
        %v1406 = vpop.f32.mrf.mxu0
        %v1407 = vadd.f32 0.0, %v1406
        %v1408 = vpop.f32.mrf.mxu0
        %1409 = vmatprep.mubr.f32.mxu0 0.0
        %1410 = vmatmul.mubr.f32.gmra.mxu0 %v1285
        %v1411 = vpop.f32.mrf.mxu0
        %v1412 = vadd.f32 0.0, %v1411
        %v1413 = vpop.f32.mrf.mxu0
        %1414 = vmatprep.mubr.f32.mxu0 0.0
        %1415 = vmatmul.mubr.f32.gmra.mxu0 %v1286
        %v1416 = vpop.f32.mrf.mxu0
        %v1417 = vadd.f32 0.0, %v1416
        %v1418 = vpop.f32.mrf.mxu0
        %1419 = vmatprep.mubr.f32.mxu0 0.0
        %1420 = vmatmul.mubr.f32.gmra.mxu0 %v1287
        %v1421 = vpop.f32.mrf.mxu0
        %v1422 = vadd.f32 0.0, %v1421
        %v1423 = vpop.f32.mrf.mxu0
        %1424 = vmatprep.mubr.f32.mxu0 0.0
        %1425 = vmatmul.mubr.f32.gmra.mxu0 %v1288
        %v1426 = vpop.f32.mrf.mxu0
        %v1427 = vadd.f32 0.0, %v1426
        %v1428 = vpop.f32.mrf.mxu0
        %1429 = vmatprep.mubr.f32.mxu0 0.0
        %1430 = vmatmul.mubr.f32.gmra.mxu0 %v1289
        %v1431 = vpop.f32.mrf.mxu0
        %v1432 = vadd.f32 0.0, %v1431
        %v1433 = vpop.f32.mrf.mxu0
        %1434 = vmatprep.mubr.f32.mxu0 0.0
        %1435 = vmatmul.mubr.f32.gmra.mxu0 %v1290
        %v1436 = vpop.f32.mrf.mxu0
        %v1437 = vadd.f32 0.0, %v1436
        %v1438 = vpop.f32.mrf.mxu0
        %1439 = vmatprep.mubr.f32.mxu0 0.0
        %1440 = vmatmul.mubr.f32.gmra.mxu0 %v1291
        %v1441 = vpop.f32.mrf.mxu0
        %v1442 = vadd.f32 0.0, %v1441
        %v1443 = vpop.f32.mrf.mxu0
        %1444 = vmatprep.mubr.f32.mxu0 0.0
        %1445 = vmatmul.mubr.f32.gmra.mxu0 %v1292
        %v1446 = vpop.f32.mrf.mxu0
        %v1447 = vadd.f32 0.0, %v1446
        %v1448 = vpop.f32.mrf.mxu0
        %1449 = vmatprep.mubr.f32.mxu0 0.0
        %1450 = vmatmul.mubr.f32.gmra.mxu0 %v1293
        %v1451 = vpop.f32.mrf.mxu0
        %v1452 = vadd.f32 0.0, %v1451
        %v1453 = vpop.f32.mrf.mxu0
        %1454 = vmatprep.mubr.f32.mxu0 0.0
        %1455 = vmatmul.mubr.f32.gmra.mxu0 %v1294
        %v1456 = vpop.f32.mrf.mxu0
        %v1457 = vadd.f32 0.0, %v1456
        %v1458 = vpop.f32.mrf.mxu0
        %1459 = vmatprep.mubr.f32.mxu0 0.0
        %1460 = vmatmul.mubr.f32.gmra.mxu0 %v1295
        %v1461 = vpop.f32.mrf.mxu0
        %v1462 = vadd.f32 0.0, %v1461
        %v1463 = vpop.f32.mrf.mxu0
        %1464 = vmatprep.mubr.f32.mxu0 0.0
        %1465 = vmatmul.mubr.f32.gmra.mxu0 %v1296
        %v1466 = vpop.f32.mrf.mxu0
        %v1467 = vadd.f32 0.0, %v1466
        %v1468 = vpop.f32.mrf.mxu0
        %1469 = vmatprep.mubr.f32.mxu0 0.0
        %1470 = vmatmul.mubr.f32.gmra.mxu0 %v1297
        %v1471 = vpop.f32.mrf.mxu0
        %v1472 = vadd.f32 0.0, %v1471
        %v1473 = vpop.f32.mrf.mxu0
        %1474 = vmatprep.mubr.f32.mxu0 0.0
        %1475 = vmatmul.mubr.f32.gmra.mxu0 %v1298
        %v1476 = vpop.f32.mrf.mxu0
        %v1477 = vadd.f32 0.0, %v1476
        %v1478 = vpop.f32.mrf.mxu0
        %1479 = vmatprep.mubr.f32.mxu0 0.0
        %1480 = vmatmul.mubr.f32.gmra.mxu0 %v1299
        %v1481 = vpop.f32.mrf.mxu0
        %v1482 = vadd.f32 0.0, %v1481
        %v1483 = vpop.f32.mrf.mxu0
        %1484 = vmatprep.mubr.f32.mxu0 0.0
        %1485 = vmatmul.mubr.f32.gmra.mxu0 %v1300
        %v1486 = vpop.f32.mrf.mxu0
        %v1487 = vadd.f32 0.0, %v1486
        %v1488 = vpop.f32.mrf.mxu0
        %1489 = vmatprep.mubr.f32.mxu0 0.0
        %1490 = vmatmul.mubr.f32.gmra.mxu0 %v1301
        %v1491 = vpop.f32.mrf.mxu0
        %v1492 = vadd.f32 0.0, %v1491
        %v1493 = vpop.f32.mrf.mxu0
        %1494 = vmatprep.mubr.f32.mxu0 0.0
        %1495 = vmatmul.mubr.f32.gmra.mxu0 %v1302
        %v1496 = vpop.f32.mrf.mxu0
        %v1497 = vadd.f32 0.0, %v1496
        %v1498 = vpop.f32.mrf.mxu0
        %1499 = vmatprep.mubr.f32.mxu0 0.0
        %1500 = vmatmul.mubr.f32.gmra.mxu0 %v1303
        %v1501 = vpop.f32.mrf.mxu0
        %v1502 = vadd.f32 0.0, %v1501
        %v1503 = vpop.f32.mrf.mxu0
        %1504 = vmatprep.mubr.f32.mxu0 0.0
        %1505 = vmatmul.mubr.f32.gmra.mxu0 %v1304
        %v1506 = vpop.f32.mrf.mxu0
        %v1507 = vadd.f32 0.0, %v1506
        %v1508 = vpop.f32.mrf.mxu0
        %1509 = vmatprep.mubr.f32.mxu0 0.0
        %1510 = vmatmul.mubr.f32.gmra.mxu0 %v1305
        %v1511 = vpop.f32.mrf.mxu0
        %v1512 = vadd.f32 0.0, %v1511
        %v1513 = vpop.f32.mrf.mxu0
        %1514 = vmatprep.mubr.f32.mxu0 0.0
        %1515 = vmatmul.mubr.f32.gmra.mxu0 %v1306
        %v1516 = vpop.f32.mrf.mxu0
        %v1517 = vadd.f32 0.0, %v1516
        %v1518 = vpop.f32.mrf.mxu0
        %1519 = vmatprep.mubr.f32.mxu0 0.0
        %1520 = vmatmul.mubr.f32.gmra.mxu0 %v1307
        %v1521 = vpop.f32.mrf.mxu0
        %v1522 = vadd.f32 0.0, %v1521
        %v1523 = vpop.f32.mrf.mxu0
        %1524 = vmatprep.mubr.f32.mxu0 0.0
        %1525 = vmatmul.mubr.f32.gmra.mxu0 %v1308
        %v1526 = vpop.f32.mrf.mxu0
        %v1527 = vadd.f32 0.0, %v1526
        %v1528 = vpop.f32.mrf.mxu0
        %1529 = vmatprep.mubr.f32.mxu0 0.0
        %1530 = vmatmul.mubr.f32.gmra.mxu0 %v1309
        %v1531 = vpop.f32.mrf.mxu0
        %v1532 = vadd.f32 0.0, %v1531
        %v1533 = vpop.f32.mrf.mxu0
        %1534 = vmatprep.mubr.f32.mxu0 0.0
        %1535 = vmatmul.mubr.f32.gmra.mxu0 %v1310
        %v1536 = vpop.f32.mrf.mxu0
        %v1537 = vadd.f32 0.0, %v1536
        %v1538 = vpop.f32.mrf.mxu0
        %1539 = vmatprep.mubr.f32.mxu0 0.0
        %1540 = vmatmul.mubr.f32.gmra.mxu0 %v1311
        %v1541 = vpop.f32.mrf.mxu0
        %v1542 = vadd.f32 0.0, %v1541
        %v1543 = vpop.f32.mrf.mxu0
        %1544 = vmatprep.mubr.f32.mxu0 0.0
        %1545 = vmatmul.mubr.f32.gmra.mxu0 %v1312
        %v1546 = vpop.f32.mrf.mxu0
        %v1547 = vadd.f32 0.0, %v1546
        %v1548 = vpop.f32.mrf.mxu0
        %1549 = vmatprep.mubr.f32.mxu0 0.0
        %1550 = vmatmul.mubr.f32.gmra.mxu0 %v1313
        %v1551 = vpop.f32.mrf.mxu0
        %v1552 = vadd.f32 0.0, %v1551
        %v1553 = vpop.f32.mrf.mxu0
        %1554 = vdwg.mxu0
        %1555 = vst.msk [vmem:[%s237] sm:$0xff] %vm280, %v1397
        %1556 = vst.msk [vmem:[%s237 + $0x8] sm:$0xff] %vm280, %v1402
        %1557 = vst.msk [vmem:[%s237 + $0x10] sm:$0xff] %vm280, %v1407
        %1558 = vst.msk [vmem:[%s237 + $0x18] sm:$0xff] %vm280, %v1412
        %1559 = vst.msk [vmem:[%s237 + $0x20] sm:$0xff] %vm280, %v1417
        %1560 = vst.msk [vmem:[%s237 + $0x28] sm:$0xff] %vm280, %v1422
        %1561 = vst.msk [vmem:[%s237 + $0x30] sm:$0xff] %vm280, %v1427
        %1562 = vst.msk [vmem:[%s237 + $0x38] sm:$0xff] %vm280, %v1432
        %1563 = vst.msk [vmem:[%s237 + $0x40] sm:$0xff] %vm280, %v1437
        %1564 = vst.msk [vmem:[%s237 + $0x48] sm:$0xff] %vm280, %v1442
        %1565 = vst.msk [vmem:[%s237 + $0x50] sm:$0xff] %vm280, %v1447
        %1566 = vst.msk [vmem:[%s237 + $0x58] sm:$0xff] %vm280, %v1452
        %1567 = vst.msk [vmem:[%s237 + $0x60] sm:$0xff] %vm280, %v1457
        %1568 = vst.msk [vmem:[%s237 + $0x68] sm:$0xff] %vm280, %v1462
        %1569 = vst.msk [vmem:[%s237 + $0x70] sm:$0xff] %vm280, %v1467
        %1570 = vst.msk [vmem:[%s237 + $0x78] sm:$0xff] %vm280, %v1472
        %1571 = vst.msk [vmem:[%s237 + $0x80] sm:$0xff] %vm280, %v1477
        %1572 = vst.msk [vmem:[%s237 + $0x88] sm:$0xff] %vm280, %v1482
        %1573 = vst.msk [vmem:[%s237 + $0x90] sm:$0xff] %vm280, %v1487
        %1574 = vst.msk [vmem:[%s237 + $0x98] sm:$0xff] %vm280, %v1492
        %1575 = vst.msk [vmem:[%s237 + $0xa0] sm:$0xff] %vm280, %v1497
        %1576 = vst.msk [vmem:[%s237 + $0xa8] sm:$0xff] %vm280, %v1502
        %1577 = vst.msk [vmem:[%s237 + $0xb0] sm:$0xff] %vm280, %v1507
        %1578 = vst.msk [vmem:[%s237 + $0xb8] sm:$0xff] %vm280, %v1512
        %1579 = vst.msk [vmem:[%s237 + $0xc0] sm:$0xff] %vm280, %v1517
        %1580 = vst.msk [vmem:[%s237 + $0xc8] sm:$0xff] %vm280, %v1522
        %1581 = vst.msk [vmem:[%s237 + $0xd0] sm:$0xff] %vm280, %v1527
        %1582 = vst.msk [vmem:[%s237 + $0xd8] sm:$0xff] %vm280, %v1532
        %1583 = vst.msk [vmem:[%s237 + $0xe0] sm:$0xff] %vm280, %v1537
        %1584 = vst.msk [vmem:[%s237 + $0xe8] sm:$0xff] %vm280, %v1542
        %1585 = vst.msk [vmem:[%s237 + $0xf0] sm:$0xff] %vm280, %v1547
        %1586 = vst.msk [vmem:[%s237 + $0xf8] sm:$0xff] %vm280, %v1552
        %v1587 = vsub.f32 %v1397, %v239
        %v1588 = vsub.f32 %v1402, %v240
        %v1589 = vsub.f32 %v1407, %v241
        %v1590 = vsub.f32 %v1412, %v242
        %v1591 = vsub.f32 %v1417, %v243
        %v1592 = vsub.f32 %v1422, %v244
        %v1593 = vsub.f32 %v1427, %v245
        %v1594 = vsub.f32 %v1432, %v246
        %v1595 = vsub.f32 %v1437, %v247
        %v1596 = vsub.f32 %v1442, %v248
        %v1597 = vsub.f32 %v1447, %v249
        %v1598 = vsub.f32 %v1452, %v250
        %v1599 = vsub.f32 %v1457, %v251
        %v1600 = vsub.f32 %v1462, %v252
        %v1601 = vsub.f32 %v1467, %v253
        %v1602 = vsub.f32 %v1472, %v254
        %v1603 = vsub.f32 %v1477, %v255
        %v1604 = vsub.f32 %v1482, %v256
        %v1605 = vsub.f32 %v1487, %v257
        %v1606 = vsub.f32 %v1492, %v258
        %v1607 = vsub.f32 %v1497, %v259
        %v1608 = vsub.f32 %v1502, %v260
        %v1609 = vsub.f32 %v1507, %v261
        %v1610 = vsub.f32 %v1512, %v262
        %v1611 = vsub.f32 %v1517, %v263
        %v1612 = vsub.f32 %v1522, %v264
        %v1613 = vsub.f32 %v1527, %v265
        %v1614 = vsub.f32 %v1532, %v266
        %v1615 = vsub.f32 %v1537, %v267
        %v1616 = vsub.f32 %v1542, %v268
        %v1617 = vsub.f32 %v1547, %v269
        %v1618 = vsub.f32 %v1552, %v270
        %v1619 = vmul.f32 %v1587, %v1587
        %v1620 = vmul.f32 %v1588, %v1588
        %v1621 = vmul.f32 %v1589, %v1589
        %v1622 = vmul.f32 %v1590, %v1590
        %v1623 = vmul.f32 %v1591, %v1591
        %v1624 = vmul.f32 %v1592, %v1592
        %v1625 = vmul.f32 %v1593, %v1593
        %v1626 = vmul.f32 %v1594, %v1594
        %v1627 = vmul.f32 %v1595, %v1595
        %v1628 = vmul.f32 %v1596, %v1596
        %v1629 = vmul.f32 %v1597, %v1597
        %v1630 = vmul.f32 %v1598, %v1598
        %v1631 = vmul.f32 %v1599, %v1599
        %v1632 = vmul.f32 %v1600, %v1600
        %v1633 = vmul.f32 %v1601, %v1601
        %v1634 = vmul.f32 %v1602, %v1602
        %v1635 = vmul.f32 %v1603, %v1603
        %v1636 = vmul.f32 %v1604, %v1604
        %v1637 = vmul.f32 %v1605, %v1605
        %v1638 = vmul.f32 %v1606, %v1606
        %v1639 = vmul.f32 %v1607, %v1607
        %v1640 = vmul.f32 %v1608, %v1608
        %v1641 = vmul.f32 %v1609, %v1609
        %v1642 = vmul.f32 %v1610, %v1610
        %v1643 = vmul.f32 %v1611, %v1611
        %v1644 = vmul.f32 %v1612, %v1612
        %v1645 = vmul.f32 %v1613, %v1613
        %v1646 = vmul.f32 %v1614, %v1614
        %v1647 = vmul.f32 %v1615, %v1615
        %v1648 = vmul.f32 %v1616, %v1616
        %v1649 = vmul.f32 %v1617, %v1617
        %v1650 = vmul.f32 %v1618, %v1618
        %v1651 = vsel %vm280, %v1619, 0.0
        %v1652 = vsel %vm280, %v1620, 0.0
        %v1653 = vadd.f32 %v1651, %v1652
        %v1654 = vsel %vm280, %v1621, 0.0
        %v1655 = vadd.f32 %v1653, %v1654
        %v1656 = vsel %vm280, %v1622, 0.0
        %v1657 = vadd.f32 %v1655, %v1656
        %v1658 = vsel %vm280, %v1623, 0.0
        %v1659 = vadd.f32 %v1657, %v1658
        %v1660 = vsel %vm280, %v1624, 0.0
        %v1661 = vadd.f32 %v1659, %v1660
        %v1662 = vsel %vm280, %v1625, 0.0
        %v1663 = vadd.f32 %v1661, %v1662
        %v1664 = vsel %vm280, %v1626, 0.0
        %v1665 = vadd.f32 %v1663, %v1664
        %v1666 = vsel %vm280, %v1627, 0.0
        %v1667 = vadd.f32 %v1665, %v1666
        %v1668 = vsel %vm280, %v1628, 0.0
        %v1669 = vadd.f32 %v1667, %v1668
        %v1670 = vsel %vm280, %v1629, 0.0
        %v1671 = vadd.f32 %v1669, %v1670
        %v1672 = vsel %vm280, %v1630, 0.0
        %v1673 = vadd.f32 %v1671, %v1672
        %v1674 = vsel %vm280, %v1631, 0.0
        %v1675 = vadd.f32 %v1673, %v1674
        %v1676 = vsel %vm280, %v1632, 0.0
        %v1677 = vadd.f32 %v1675, %v1676
        %v1678 = vsel %vm280, %v1633, 0.0
        %v1679 = vadd.f32 %v1677, %v1678
        %v1680 = vsel %vm280, %v1634, 0.0
        %v1681 = vadd.f32 %v1679, %v1680
        %v1682 = vsel %vm280, %v1635, 0.0
        %v1683 = vadd.f32 %v1681, %v1682
        %v1684 = vsel %vm280, %v1636, 0.0
        %v1685 = vadd.f32 %v1683, %v1684
        %v1686 = vsel %vm280, %v1637, 0.0
        %v1687 = vadd.f32 %v1685, %v1686
        %v1688 = vsel %vm280, %v1638, 0.0
        %v1689 = vadd.f32 %v1687, %v1688
        %v1690 = vsel %vm280, %v1639, 0.0
        %v1691 = vadd.f32 %v1689, %v1690
        %v1692 = vsel %vm280, %v1640, 0.0
        %v1693 = vadd.f32 %v1691, %v1692
        %v1694 = vsel %vm280, %v1641, 0.0
        %v1695 = vadd.f32 %v1693, %v1694
        %v1696 = vsel %vm280, %v1642, 0.0
        %v1697 = vadd.f32 %v1695, %v1696
        %v1698 = vsel %vm280, %v1643, 0.0
        %v1699 = vadd.f32 %v1697, %v1698
        %v1700 = vsel %vm280, %v1644, 0.0
        %v1701 = vadd.f32 %v1699, %v1700
        %v1702 = vsel %vm280, %v1645, 0.0
        %v1703 = vadd.f32 %v1701, %v1702
        %v1704 = vsel %vm280, %v1646, 0.0
        %v1705 = vadd.f32 %v1703, %v1704
        %v1706 = vsel %vm280, %v1647, 0.0
        %v1707 = vadd.f32 %v1705, %v1706
        %v1708 = vsel %vm280, %v1648, 0.0
        %v1709 = vadd.f32 %v1707, %v1708
        %v1710 = vsel %vm280, %v1649, 0.0
        %v1711 = vadd.f32 %v1709, %v1710
        %v1712 = vsel %vm280, %v1650, 0.0
        %v1713 = vadd.f32 %v1711, %v1712
        %1714 = vst.msk [vmem:[%s226] sm:$0xff] %vm280, %v1713
        %s1715 = smul.u32 32, %s20
        %p1716 = scmp.lt.s32.totalorder %s1715, 127
        %s1717 = scalar_select %p1716, %s1715, 127
        %s1718 = smul.addr %s1717, 8
        %s1719 = scalar_lea.vmem %s4, %s1718
        %s1720 = sand.u32 %s143, 1
        %s1721 = scalar_lea.sflag [#allocation3], %s1720
        %s1722 = sand.u32 %s143, 1
        %s1723 = smul.addr %s1722, 8
        %s1724 = scalar_lea.vmem [#allocation2], %s1723
        // Predicated region
        $region37: #{tpu_custom_call.1} parent=35 // pred_check
          %p1725 = pneg %p127
        $region38: #{tpu_custom_call.1} parent=35 // pred_check_branch
          %1727 = sbr.rel (%p1725) target = $region40
        $region39: #{tpu_custom_call.1} parent=35 // pred_region
          %s1728 = smul.u32 32, %s20
        $region40: #{tpu_custom_call.1} parent=35 // pred_fallthru
          _
        // Predicated region
        $region41: #{tpu_custom_call.1} parent=35 // pred_check
          %p1729 = pneg %p153
        $region42: #{tpu_custom_call.1} parent=35 // pred_check_branch
          %1731 = sbr.rel (%p1729) target = $region44
        $region43: #{tpu_custom_call.1} parent=35 // pred_region
          %s1733 = ssub.s32 128, 128
          %1734 = vsyncadd %s1721, %s1733
          %s1735 = smul.addr %s20, 128
          %s1736 = scalar_lea.hbm %s5, %s1735
          %s1738 = sshll.u32 %s1724, 4
          %s1739 = int_to_ptr.vmem [resolvable:$true] %s1738
          %1741 = dma.vmem_to_hbm [thread:$0]  %s1739, 128, %s1736, %s1721
        $region44: #{tpu_custom_call.1} parent=35 // pred_fallthru
          _
      $region36: #{tpu_custom_call.1} parent=5 // pred_fallthru
        _
      %p1742 = scmp.le.s32.totalorder 2, %s15
      // Predicated region
      $region45: #{tpu_custom_call.1} parent=5 // pred_check
        %p1743 = pneg %p1742
      $region46: #{tpu_custom_call.1} parent=5 // pred_check_branch
        %1745 = sbr.rel (%p1743) target = $region48
      $region47: #{tpu_custom_call.1} parent=5 // pred_region
        %s1746 = ssub.s32 %s15, 2
        // Predicated region
        $region49: #{tpu_custom_call.1} parent=47 // pred_check
          %p1747 = pneg %p133
        $region50: #{tpu_custom_call.1} parent=47 // pred_check_branch
          %1749 = sbr.rel (%p1747) target = $region52
        $region51: #{tpu_custom_call.1} parent=47 // pred_region
          %s1750 = smul.u32 32, %s21
          %p1751 = scmp.lt.s32.totalorder %s1750, 127
          %s1752 = scalar_select %p1751, %s1750, 127
          %s1753 = smul.addr %s1752, 8
          %s1754 = scalar_lea.vmem %s4, %s1753
        $region52: #{tpu_custom_call.1} parent=47 // pred_fallthru
          _
        // Predicated region
        $region53: #{tpu_custom_call.1} parent=47 // pred_check
          %p1755 = pneg %p159
        $region54: #{tpu_custom_call.1} parent=47 // pred_check_branch
          %1757 = sbr.rel (%p1755) target = $region56
        $region55: #{tpu_custom_call.1} parent=47 // pred_region
          %s1758 = sand.u32 %s144, 1
          %s1759 = scalar_lea.sflag [#allocation3], %s1758
          %s1760 = sand.u32 %s144, 1
          %s1761 = smul.addr %s1760, 8
          %s1762 = scalar_lea.vmem [#allocation2], %s1761
          %1763 = dma.done %s1759, 128
        $region56: #{tpu_custom_call.1} parent=47 // pred_fallthru
          _
      $region48: #{tpu_custom_call.1} parent=5 // pred_fallthru
        _
    $region6: #{tpu_custom_call.1} parent=1 // loop_footer
      %s19 = sadd.s32 1, %s15
    $region7: #{tpu_custom_call.1} parent=1 // loop_footer_branch
      %14 = sbr.rel target = $region3
    $region8: #{tpu_custom_call.1} parent=1 // loop_exit
      _
    %1764 = vsyncpa [#allocation3], 1
    %s1765 = scalar_lea.sflag [#allocation3], 1
    %1766 = vsyncpa %s1765, 1

</llo_original>
